<compile_context>
chip_gen: v7x
topology: tpu7x:2x2x1
jax: 0.10.0
libtpu: 0.0.40
codegen_flags: <defaults>
</compile_context>

<pallas_src>
import jax
import jax.numpy as jnp
from jax import lax
from jax.experimental import pallas as pl
from jax.experimental.pallas import tpu as pltpu


def _softplus(t):
    return jnp.maximum(t, 0.0) + jnp.log1p(jnp.exp(-jnp.abs(t)))


def _sigmoid(t):
    return 1.0 / (1.0 + jnp.exp(-t))


def make_rim_kernel(B, E, OD, PACK):
    f32 = jnp.float32

    def rim_kernel(x_ref, base_ref, eps1_ref, eps2_ref,
                   gW1a_ref, gW1b_ref, gb1_ref, gW2_ref, gb2_ref,
                   Wenc1_ref, benc1_ref, Wpgb_ref, bpgb_ref, Wqgb_ref, bqgb_ref,
                   Whead_ref, WheadT_ref, bh_r_ref, bh_c_ref,
                   oW12_ref, ob12_ref,
                   out_ref):
        x = x_ref[...]          # (1, F)
        base = base_ref[...]    # (B, F)

        # gen_edge_emb: Linear(2F,E) + ReLU + Dropout(id) + Linear(E,E).
        # node_pairs[i] = concat(base_nodes[i], x) -> split matmul, no concat.
        h1 = (jnp.dot(base, gW1a_ref[...], preferred_element_type=f32)
              + jnp.dot(x, gW1b_ref[...], preferred_element_type=f32)
              + gb1_ref[...])
        h1 = jnp.maximum(h1, 0.0)
        edge = jnp.dot(h1, gW2_ref[...], preferred_element_type=f32) + gb2_ref[...]

        # Fused enc layer-1 for both trunks: edge @ [prior.enc | post.enc].
        h_both = jnp.maximum(
            jnp.dot(edge, Wenc1_ref[...], preferred_element_type=f32)
            + benc1_ref[...], 0.0)                       # (B, 2E)
        h_p = h_both[:, :E]                              # prior trunk hidden
        h_q = h_both[:, E:]                              # post trunk hidden

        # Fused g/b branches per trunk: h @ [enc_g | enc_b].
        pg_pb = jnp.maximum(
            jnp.dot(h_p, Wpgb_ref[...], preferred_element_type=f32)
            + bpgb_ref[...], 0.0)                        # (B, 2E)
        qg_qb = jnp.maximum(
            jnp.dot(h_q, Wqgb_ref[...], preferred_element_type=f32)
            + bqgb_ref[...], 0.0)                        # (B, 2E)
        prior_g = pg_pb[:, :E]
        prior_b = pg_pb[:, E:]
        post_g = qg_qb[:, :E]
        post_b = qg_qb[:, E:]

        # Prior mean/std as (B, 1) columns (matches torch's un-squeezed shape).
        heads_cols = (jnp.dot(prior_g, Whead_ref[...],
                              preferred_element_type=f32) + bh_r_ref[...])   # (B, 8)
        prior_mean_col = heads_cols[:, 0:1]              # (B, 1)
        prior_std_col = _softplus(heads_cols[:, 1:2])    # (B, 1)

        # One stacked row-form head matmul for the remaining 5 heads.
        stacked = jnp.concatenate([prior_b, post_g, post_b], axis=0)   # (3B, E)
        heads_rows = lax.dot_general(WheadT_ref[...], stacked,
                                     (((1,), (1,)), ((), ())),
                                     preferred_element_type=f32) + bh_c_ref[...]  # (8, 3B)

        prior_mij = 0.4 * _sigmoid(heads_rows[2:3, 0:B])          # (1, B)
        post_mean_g = heads_rows[3:4, B:2 * B]                    # (1, B)
        post_std_g = _softplus(heads_rows[4:5, B:2 * B])          # (1, B)
        post_mean_approx = heads_rows[5:6, 2 * B:3 * B]           # (1, B)
        post_std_approx = _softplus(heads_rows[6:7, 2 * B:3 * B]) # (1, B)

        nij = _softplus(post_mean_approx) + 0.01
        nij_ = 2.0 * nij * post_std_approx * post_std_approx
        post_mij = 0.5 * (1.0 + nij_ - jnp.sqrt(nij_ * nij_ + 1.0))   # (1, B)

        # sample_repara (Train branch)
        eps1 = eps1_ref[...]                           # (1, B)
        eps2 = eps2_ref[...]                           # (1, B)
        std_alpha = jnp.sqrt(post_mij * (1.0 - post_mij))
        alpha_tilde = _softplus(eps1 * std_alpha + post_mij)          # (1, B)
        mean_sij = alpha_tilde * post_mean_g
        std_sij = jnp.sqrt(alpha_tilde) * post_std_g
        s_ij = eps2 * std_sij + mean_sij
        alpha_bar = _softplus(s_ij * alpha_tilde)                     # (1, B)

        # kld_loss_gauss: torch broadcast (B,) against (B,1) -> (B,B)
        e = 1e-6
        a1 = alpha_tilde * post_mean_g                 # (1, B)
        a2 = jnp.sqrt(alpha_tilde) * post_std_g        # (1, B)
        a3 = prior_mean_col * alpha_tilde              # (B, B)
        a4 = prior_std_col * jnp.sqrt(alpha_tilde)     # (B, B)
        kld = (2.0 * jnp.log(a4 + e) - 2.0 * jnp.log(a2 + e)
               + (a2 * a2 + (a1 - a3) * (a1 - a3)) / ((a4 + e) * (a4 + e)) - 1.0)
        kl_g = 0.5 * jnp.sum(jnp.abs(kld), keepdims=True)             # (1, 1)

        # kld_loss_binomial_upper_bound
        kldb = (prior_mij - post_mij
                + post_mij * (jnp.log(post_mij + e) - jnp.log(prior_mij + e)))
        kl_b = jnp.sum(jnp.abs(kldb), keepdims=True)                  # (1, 1)

        # H_g = alpha_bar @ base_nodes + x ; folded out_layer (one matmul).
        H_g = jnp.dot(alpha_bar, base, preferred_element_type=f32) + x   # (1, F)
        x_out = (jnp.dot(H_g, oW12_ref[...], preferred_element_type=f32)
                 + ob12_ref[...])                                      # (1, OD)

        # Pack everything into one lane-dense (1, PACK) row:
        # [x_out | kl_g | kl_b | alpha_bar | zero pad]
        out_ref[...] = jnp.zeros((1, PACK), f32)
        out_ref[:, 0:OD] = x_out
        out_ref[:, OD:OD + 1] = kl_g
        out_ref[:, OD + 1:OD + 2] = kl_b
        out_ref[:, OD + 2:OD + 2 + B] = alpha_bar

    return rim_kernel


def build_params(key, F, B, E, LD, OD):
    ks = jax.random.split(key, 20)

    def w(k, shape, s=0.1):
        return jax.random.normal(k, shape, jnp.float32) * s

    gen_W1 = w(ks[1], (2 * F, E))
    Whead = jnp.concatenate(
        [w(ks[7], (E, 7)), jnp.zeros((E, 1), jnp.float32)], axis=1)   # (E, 8)
    bhead = jnp.concatenate(
        [w(ks[8], (1, 7), 0.01), jnp.zeros((1, 1), jnp.float32)], axis=1)
    oW1 = w(ks[9], (F, LD))
    ob1 = w(ks[10], (1, LD), 0.01)
    oW2 = w(ks[11], (LD, OD))
    ob2 = w(ks[12], (1, OD), 0.01)

    params = dict(
        base_nodes=w(ks[0], (B, F), 1.0),
        # gen_edge_emb pair weight pre-split into the base / x halves.
        gW1a=gen_W1[:F],
        gW1b=gen_W1[F:],
        gb1=w(ks[2], (1, E), 0.01),
        gW2=w(ks[3], (E, E)),
        gb2=w(ks[4], (1, E), 0.01),
        # Fused enc trunks: layer1 = [prior.enc | post.enc];
        # Wpgb = [prior.enc_g | prior.enc_b]; Wqgb = [post.enc_g | post.enc_b].
        Wenc1=w(ks[5], (E, 2 * E)),
        benc1=w(ks[6], (1, 2 * E), 0.01),
        Wpgb=w(ks[13], (E, 2 * E)),
        bpgb=w(ks[14], (1, 2 * E), 0.01),
        Wqgb=w(ks[15], (E, 2 * E)),
        bqgb=w(ks[16], (1, 2 * E), 0.01),
        # Packed 1-output heads, columns:
        # 0 prior.enc_mean, 1 prior.enc_std, 2 prior_mij,
        # 3 post.enc_mean, 4 post.enc_std, 5 post_mean_approx_g,
        # 6 post_std_approx_g, 7 zero pad
        Whead=Whead,
        WheadT=Whead.T,           # (8, E)
        bh_r=bhead,               # (1, 8)
        bh_c=bhead.reshape(8, 1), # (8, 1)
        # out_layer folded: Linear(F,LD) -> Dropout(id) -> Linear(LD,OD)
        oW12=oW1 @ oW2,           # (F, OD)
        ob12=ob1 @ oW2 + ob2,     # (1, OD)
    )
    return params


def rim_forward(x, eps1, eps2, p, F, B, E, LD, OD):
    PACK = 128
    assert OD + 2 + B <= PACK, "packed output row does not fit in 128 lanes"

    args = (x, p["base_nodes"], eps1, eps2,
            p["gW1a"], p["gW1b"], p["gb1"], p["gW2"], p["gb2"],
            p["Wenc1"], p["benc1"], p["Wpgb"], p["bpgb"], p["Wqgb"], p["bqgb"],
            p["Whead"], p["WheadT"], p["bh_r"], p["bh_c"],
            p["oW12"], p["ob12"])

    flops = 2 * (B * F * E + F * E + B * E * E + 3 * B * E * 2 * E
                 + B * E * 8 + 8 * E * 3 * B + B * F + F * OD)
    transcendentals = 4 * B * B + 40 * B
    bytes_accessed = sum(int(a.size) * a.dtype.itemsize for a in args) + PACK * 4

    kernel = make_rim_kernel(B, E, OD, PACK)
    fn = pl.pallas_call(
        kernel,
        out_shape=jax.ShapeDtypeStruct((1, PACK), jnp.float32),
        in_specs=[pl.BlockSpec(memory_space=pltpu.MemorySpace.VMEM)
                  for _ in range(len(args))],
        out_specs=pl.BlockSpec(memory_space=pltpu.MemorySpace.VMEM),
        cost_estimate=pl.CostEstimate(flops=flops,
                                      transcendentals=transcendentals,
                                      bytes_accessed=bytes_accessed),
    )
    packed = fn(*args)
    x_out = packed[0, 0:OD]                     # (OD,)
    kl_g = packed[0, OD]                        # scalar
    kl_b = packed[0, OD + 1]                    # scalar
    alpha_bars = packed[0, OD + 2:OD + 2 + B]   # (B,)
    return x_out, kl_g, kl_b, alpha_bars


if __name__ == "__main__":
    # feature_dim must equal g_dim for out_layer(H_g) to type-check in torch.
    F, B, E, LD, OD = 128, 8, 128, 128, 64   # feature/g_dim, base_num, edge_dim, last_dense, out_dim

    key = jax.random.PRNGKey(0)
    kp, kx, ke1, ke2 = jax.random.split(key, 4)
    params = build_params(kp, F, B, E, LD, OD)
    x = jax.random.normal(kx, (1, F), jnp.float32)      # single query embedding
    eps1 = jax.random.normal(ke1, (1, B), jnp.float32)  # sample_repara eps
    eps2 = jax.random.normal(ke2, (1, B), jnp.float32)  # sample_repara eps_2

    x_out, kl_g, kl_b, alpha_bars = rim_forward(x, eps1, eps2, params,
                                                F, B, E, LD, OD)
    jax.block_until_ready((x_out, kl_g, kl_b, alpha_bars))
    print("KERNEL_OK")
</pallas_src>

<mosaic_0001>
module attributes {stable_mosaic.version = 11 : i64} {
  func.func @rim_kernel(%arg0: memref<1x128xf32, #tpu.memory_space<vmem>>, %arg1: memref<8x128xf32, #tpu.memory_space<vmem>>, %arg2: memref<1x8xf32, #tpu.memory_space<vmem>>, %arg3: memref<1x8xf32, #tpu.memory_space<vmem>>, %arg4: memref<128x128xf32, #tpu.memory_space<vmem>>, %arg5: memref<128x128xf32, #tpu.memory_space<vmem>>, %arg6: memref<1x128xf32, #tpu.memory_space<vmem>>, %arg7: memref<128x128xf32, #tpu.memory_space<vmem>>, %arg8: memref<1x128xf32, #tpu.memory_space<vmem>>, %arg9: memref<128x256xf32, #tpu.memory_space<vmem>>, %arg10: memref<1x256xf32, #tpu.memory_space<vmem>>, %arg11: memref<128x256xf32, #tpu.memory_space<vmem>>, %arg12: memref<1x256xf32, #tpu.memory_space<vmem>>, %arg13: memref<128x256xf32, #tpu.memory_space<vmem>>, %arg14: memref<1x256xf32, #tpu.memory_space<vmem>>, %arg15: memref<128x8xf32, #tpu.memory_space<vmem>>, %arg16: memref<8x128xf32, #tpu.memory_space<vmem>>, %arg17: memref<1x8xf32, #tpu.memory_space<vmem>>, %arg18: memref<8x1xf32, #tpu.memory_space<vmem>>, %arg19: memref<128x64xf32, #tpu.memory_space<vmem>>, %arg20: memref<1x64xf32, #tpu.memory_space<vmem>>, %arg21: memref<1x128xf32, #tpu.memory_space<vmem>>) attributes {dimension_semantics = [], scalar_prefetch = 0 : i64, scratch_operands = 0 : i64, tpu.core_type = #tpu.core_type<tc>} {
    %c0 = arith.constant 0 : index
    %c0_0 = arith.constant 0 : index
    %0 = vector.load %arg0[%c0, %c0_0] : memref<1x128xf32, #tpu.memory_space<vmem>>, vector<1x128xf32>
    %c0_1 = arith.constant 0 : index
    %c0_2 = arith.constant 0 : index
    %1 = vector.load %arg1[%c0_1, %c0_2] : memref<8x128xf32, #tpu.memory_space<vmem>>, vector<8x128xf32>
    %c0_3 = arith.constant 0 : index
    %c0_4 = arith.constant 0 : index
    %2 = vector.load %arg4[%c0_3, %c0_4] : memref<128x128xf32, #tpu.memory_space<vmem>>, vector<128x128xf32>
    %cst = arith.constant dense<0.000000e+00> : vector<8x128xf32>
    %3 = tpu.matmul %1, %2, %cst {dimension_numbers = #tpu.dot_dimension_numbers<[1], [0], [0], [1], [0, 0, 1, 1], [], []>} : vector<8x128xf32>, vector<128x128xf32>, vector<8x128xf32> -> vector<8x128xf32>
    %c0_5 = arith.constant 0 : index
    %c0_6 = arith.constant 0 : index
    %4 = vector.load %arg5[%c0_5, %c0_6] : memref<128x128xf32, #tpu.memory_space<vmem>>, vector<128x128xf32>
    %cst_7 = arith.constant dense<0.000000e+00> : vector<1x128xf32>
    %5 = tpu.matmul %0, %4, %cst_7 {dimension_numbers = #tpu.dot_dimension_numbers<[1], [0], [0], [1], [0, 0, 1, 1], [], []>} : vector<1x128xf32>, vector<128x128xf32>, vector<1x128xf32> -> vector<1x128xf32>
    %6 = vector.broadcast %5 : vector<1x128xf32> to vector<8x128xf32>
    %7 = arith.addf %3, %6 : vector<8x128xf32>
    %c0_8 = arith.constant 0 : index
    %c0_9 = arith.constant 0 : index
    %8 = vector.load %arg6[%c0_8, %c0_9] : memref<1x128xf32, #tpu.memory_space<vmem>>, vector<1x128xf32>
    %9 = vector.broadcast %8 : vector<1x128xf32> to vector<8x128xf32>
    %10 = arith.addf %7, %9 : vector<8x128xf32>
    %cst_10 = arith.constant 0.000000e+00 : f32
    %11 = vector.broadcast %cst_10 : f32 to vector<8x128xf32>
    %12 = arith.maximumf %10, %11 : vector<8x128xf32>
    %c0_11 = arith.constant 0 : index
    %c0_12 = arith.constant 0 : index
    %13 = vector.load %arg7[%c0_11, %c0_12] : memref<128x128xf32, #tpu.memory_space<vmem>>, vector<128x128xf32>
    %cst_13 = arith.constant dense<0.000000e+00> : vector<8x128xf32>
    %14 = tpu.matmul %12, %13, %cst_13 {dimension_numbers = #tpu.dot_dimension_numbers<[1], [0], [0], [1], [0, 0, 1, 1], [], []>} : vector<8x128xf32>, vector<128x128xf32>, vector<8x128xf32> -> vector<8x128xf32>
    %c0_14 = arith.constant 0 : index
    %c0_15 = arith.constant 0 : index
    %15 = vector.load %arg8[%c0_14, %c0_15] : memref<1x128xf32, #tpu.memory_space<vmem>>, vector<1x128xf32>
    %16 = vector.broadcast %15 : vector<1x128xf32> to vector<8x128xf32>
    %17 = arith.addf %14, %16 : vector<8x128xf32>
    %c0_16 = arith.constant 0 : index
    %c0_17 = arith.constant 0 : index
    %18 = vector.load %arg9[%c0_16, %c0_17] : memref<128x256xf32, #tpu.memory_space<vmem>>, vector<128x256xf32>
    %cst_18 = arith.constant dense<0.000000e+00> : vector<8x256xf32>
    %19 = tpu.matmul %17, %18, %cst_18 {dimension_numbers = #tpu.dot_dimension_numbers<[1], [0], [0], [1], [0, 0, 1, 1], [], []>} : vector<8x128xf32>, vector<128x256xf32>, vector<8x256xf32> -> vector<8x256xf32>
    %c0_19 = arith.constant 0 : index
    %c0_20 = arith.constant 0 : index
    %20 = vector.load %arg10[%c0_19, %c0_20] : memref<1x256xf32, #tpu.memory_space<vmem>>, vector<1x256xf32>
    %21 = vector.broadcast %20 : vector<1x256xf32> to vector<8x256xf32>
    %22 = arith.addf %19, %21 : vector<8x256xf32>
    %cst_21 = arith.constant 0.000000e+00 : f32
    %23 = vector.broadcast %cst_21 : f32 to vector<8x256xf32>
    %24 = arith.maximumf %22, %23 : vector<8x256xf32>
    %25 = vector.extract_strided_slice %24 {offsets = [0, 0], sizes = [8, 128], strides = [1, 1]} : vector<8x256xf32> to vector<8x128xf32>
    %26 = vector.extract_strided_slice %24 {offsets = [0, 128], sizes = [8, 128], strides = [1, 1]} : vector<8x256xf32> to vector<8x128xf32>
    %c0_22 = arith.constant 0 : index
    %c0_23 = arith.constant 0 : index
    %27 = vector.load %arg11[%c0_22, %c0_23] : memref<128x256xf32, #tpu.memory_space<vmem>>, vector<128x256xf32>
    %cst_24 = arith.constant dense<0.000000e+00> : vector<8x256xf32>
    %28 = tpu.matmul %25, %27, %cst_24 {dimension_numbers = #tpu.dot_dimension_numbers<[1], [0], [0], [1], [0, 0, 1, 1], [], []>} : vector<8x128xf32>, vector<128x256xf32>, vector<8x256xf32> -> vector<8x256xf32>
    %c0_25 = arith.constant 0 : index
    %c0_26 = arith.constant 0 : index
    %29 = vector.load %arg12[%c0_25, %c0_26] : memref<1x256xf32, #tpu.memory_space<vmem>>, vector<1x256xf32>
    %30 = vector.broadcast %29 : vector<1x256xf32> to vector<8x256xf32>
    %31 = arith.addf %28, %30 : vector<8x256xf32>
    %cst_27 = arith.constant 0.000000e+00 : f32
    %32 = vector.broadcast %cst_27 : f32 to vector<8x256xf32>
    %33 = arith.maximumf %31, %32 : vector<8x256xf32>
    %c0_28 = arith.constant 0 : index
    %c0_29 = arith.constant 0 : index
    %34 = vector.load %arg13[%c0_28, %c0_29] : memref<128x256xf32, #tpu.memory_space<vmem>>, vector<128x256xf32>
    %cst_30 = arith.constant dense<0.000000e+00> : vector<8x256xf32>
    %35 = tpu.matmul %26, %34, %cst_30 {dimension_numbers = #tpu.dot_dimension_numbers<[1], [0], [0], [1], [0, 0, 1, 1], [], []>} : vector<8x128xf32>, vector<128x256xf32>, vector<8x256xf32> -> vector<8x256xf32>
    %c0_31 = arith.constant 0 : index
    %c0_32 = arith.constant 0 : index
    %36 = vector.load %arg14[%c0_31, %c0_32] : memref<1x256xf32, #tpu.memory_space<vmem>>, vector<1x256xf32>
    %37 = vector.broadcast %36 : vector<1x256xf32> to vector<8x256xf32>
    %38 = arith.addf %35, %37 : vector<8x256xf32>
    %cst_33 = arith.constant 0.000000e+00 : f32
    %39 = vector.broadcast %cst_33 : f32 to vector<8x256xf32>
    %40 = arith.maximumf %38, %39 : vector<8x256xf32>
    %41 = vector.extract_strided_slice %33 {offsets = [0, 0], sizes = [8, 128], strides = [1, 1]} : vector<8x256xf32> to vector<8x128xf32>
    %42 = vector.extract_strided_slice %33 {offsets = [0, 128], sizes = [8, 128], strides = [1, 1]} : vector<8x256xf32> to vector<8x128xf32>
    %43 = vector.extract_strided_slice %40 {offsets = [0, 0], sizes = [8, 128], strides = [1, 1]} : vector<8x256xf32> to vector<8x128xf32>
    %44 = vector.extract_strided_slice %40 {offsets = [0, 128], sizes = [8, 128], strides = [1, 1]} : vector<8x256xf32> to vector<8x128xf32>
    %c0_34 = arith.constant 0 : index
    %c0_35 = arith.constant 0 : index
    %45 = vector.load %arg15[%c0_34, %c0_35] : memref<128x8xf32, #tpu.memory_space<vmem>>, vector<128x8xf32>
    %cst_36 = arith.constant dense<0.000000e+00> : vector<8x8xf32>
    %46 = tpu.matmul %41, %45, %cst_36 {dimension_numbers = #tpu.dot_dimension_numbers<[1], [0], [0], [1], [0, 0, 1, 1], [], []>} : vector<8x128xf32>, vector<128x8xf32>, vector<8x8xf32> -> vector<8x8xf32>
    %c0_37 = arith.constant 0 : index
    %c0_38 = arith.constant 0 : index
    %47 = vector.load %arg17[%c0_37, %c0_38] : memref<1x8xf32, #tpu.memory_space<vmem>>, vector<1x8xf32>
    %48 = vector.broadcast %47 : vector<1x8xf32> to vector<8x8xf32>
    %49 = arith.addf %46, %48 : vector<8x8xf32>
    %50 = vector.extract_strided_slice %49 {offsets = [0, 0], sizes = [8, 1], strides = [1, 1]} : vector<8x8xf32> to vector<8x1xf32>
    %51 = vector.extract_strided_slice %49 {offsets = [0, 1], sizes = [8, 1], strides = [1, 1]} : vector<8x8xf32> to vector<8x1xf32>
    %cst_39 = arith.constant 0.000000e+00 : f32
    %52 = vector.broadcast %cst_39 : f32 to vector<8x1xf32>
    %53 = arith.maximumf %51, %52 : vector<8x1xf32>
    %54 = math.absf %51 : vector<8x1xf32>
    %cst_40 = arith.constant 0.000000e+00 : f32
    %55 = vector.broadcast %cst_40 : f32 to vector<8x1xf32>
    %56 = arith.subf %55, %54 : vector<8x1xf32>
    %57 = math.exp %56 : vector<8x1xf32>
    %58 = math.log1p %57 : vector<8x1xf32>
    %59 = arith.addf %53, %58 : vector<8x1xf32>
    %60 = tpu.concatenate %42, %43, %44 in 0 : vector<8x128xf32>, vector<8x128xf32>, vector<8x128xf32> -> vector<24x128xf32>
    %c0_41 = arith.constant 0 : index
    %c0_42 = arith.constant 0 : index
    %61 = vector.load %arg16[%c0_41, %c0_42] : memref<8x128xf32, #tpu.memory_space<vmem>>, vector<8x128xf32>
    %cst_43 = arith.constant dense<0.000000e+00> : vector<8x24xf32>
    %62 = tpu.matmul %61, %60, %cst_43 {dimension_numbers = #tpu.dot_dimension_numbers<[1], [1], [0], [0], [0, 0, 1, 0], [], []>} : vector<8x128xf32>, vector<24x128xf32>, vector<8x24xf32> -> vector<8x24xf32>
    %c0_44 = arith.constant 0 : index
    %c0_45 = arith.constant 0 : index
    %63 = vector.load %arg18[%c0_44, %c0_45] : memref<8x1xf32, #tpu.memory_space<vmem>>, vector<8x1xf32>
    %64 = vector.broadcast %63 : vector<8x1xf32> to vector<8x24xf32>
    %65 = arith.addf %62, %64 : vector<8x24xf32>
    %66 = vector.extract_strided_slice %65 {offsets = [2, 0], sizes = [1, 8], strides = [1, 1]} : vector<8x24xf32> to vector<1x8xf32>
    %cst_46 = arith.constant 0.000000e+00 : f32
    %67 = vector.broadcast %cst_46 : f32 to vector<1x8xf32>
    %68 = arith.subf %67, %66 : vector<1x8xf32>
    %69 = math.exp %68 : vector<1x8xf32>
    %cst_47 = arith.constant 1.000000e+00 : f32
    %70 = vector.broadcast %cst_47 : f32 to vector<1x8xf32>
    %71 = arith.addf %70, %69 : vector<1x8xf32>
    %cst_48 = arith.constant 1.000000e+00 : f32
    %72 = vector.broadcast %cst_48 : f32 to vector<1x8xf32>
    %73 = arith.divf %72, %71 : vector<1x8xf32>
    %cst_49 = arith.constant 4.000000e-01 : f32
    %74 = vector.broadcast %cst_49 : f32 to vector<1x8xf32>
    %75 = arith.mulf %74, %73 : vector<1x8xf32>
    %76 = vector.extract_strided_slice %65 {offsets = [3, 8], sizes = [1, 8], strides = [1, 1]} : vector<8x24xf32> to vector<1x8xf32>
    %77 = vector.extract_strided_slice %65 {offsets = [4, 8], sizes = [1, 8], strides = [1, 1]} : vector<8x24xf32> to vector<1x8xf32>
    %cst_50 = arith.constant 0.000000e+00 : f32
    %78 = vector.broadcast %cst_50 : f32 to vector<1x8xf32>
    %79 = arith.maximumf %77, %78 : vector<1x8xf32>
    %80 = math.absf %77 : vector<1x8xf32>
    %cst_51 = arith.constant 0.000000e+00 : f32
    %81 = vector.broadcast %cst_51 : f32 to vector<1x8xf32>
    %82 = arith.subf %81, %80 : vector<1x8xf32>
    %83 = math.exp %82 : vector<1x8xf32>
    %84 = math.log1p %83 : vector<1x8xf32>
    %85 = arith.addf %79, %84 : vector<1x8xf32>
    %86 = vector.extract_strided_slice %65 {offsets = [5, 16], sizes = [1, 8], strides = [1, 1]} : vector<8x24xf32> to vector<1x8xf32>
    %87 = vector.extract_strided_slice %65 {offsets = [6, 16], sizes = [1, 8], strides = [1, 1]} : vector<8x24xf32> to vector<1x8xf32>
    %cst_52 = arith.constant 0.000000e+00 : f32
    %88 = vector.broadcast %cst_52 : f32 to vector<1x8xf32>
    %89 = arith.maximumf %87, %88 : vector<1x8xf32>
    %90 = math.absf %87 : vector<1x8xf32>
    %cst_53 = arith.constant 0.000000e+00 : f32
    %91 = vector.broadcast %cst_53 : f32 to vector<1x8xf32>
    %92 = arith.subf %91, %90 : vector<1x8xf32>
    %93 = math.exp %92 : vector<1x8xf32>
    %94 = math.log1p %93 : vector<1x8xf32>
    %95 = arith.addf %89, %94 : vector<1x8xf32>
    %cst_54 = arith.constant 0.000000e+00 : f32
    %96 = vector.broadcast %cst_54 : f32 to vector<1x8xf32>
    %97 = arith.maximumf %86, %96 : vector<1x8xf32>
    %98 = math.absf %86 : vector<1x8xf32>
    %cst_55 = arith.constant 0.000000e+00 : f32
    %99 = vector.broadcast %cst_55 : f32 to vector<1x8xf32>
    %100 = arith.subf %99, %98 : vector<1x8xf32>
    %101 = math.exp %100 : vector<1x8xf32>
    %102 = math.log1p %101 : vector<1x8xf32>
    %103 = arith.addf %97, %102 : vector<1x8xf32>
    %cst_56 = arith.constant 0.00999999977 : f32
    %104 = vector.broadcast %cst_56 : f32 to vector<1x8xf32>
    %105 = arith.addf %103, %104 : vector<1x8xf32>
    %cst_57 = arith.constant 2.000000e+00 : f32
    %106 = vector.broadcast %cst_57 : f32 to vector<1x8xf32>
    %107 = arith.mulf %106, %105 : vector<1x8xf32>
    %108 = arith.mulf %107, %95 : vector<1x8xf32>
    %109 = arith.mulf %108, %95 : vector<1x8xf32>
    %cst_58 = arith.constant 1.000000e+00 : f32
    %110 = vector.broadcast %cst_58 : f32 to vector<1x8xf32>
    %111 = arith.addf %110, %109 : vector<1x8xf32>
    %112 = arith.mulf %109, %109 : vector<1x8xf32>
    %cst_59 = arith.constant 1.000000e+00 : f32
    %113 = vector.broadcast %cst_59 : f32 to vector<1x8xf32>
    %114 = arith.addf %112, %113 : vector<1x8xf32>
    %115 = math.sqrt %114 : vector<1x8xf32>
    %116 = arith.subf %111, %115 : vector<1x8xf32>
    %cst_60 = arith.constant 5.000000e-01 : f32
    %117 = vector.broadcast %cst_60 : f32 to vector<1x8xf32>
    %118 = arith.mulf %117, %116 : vector<1x8xf32>
    %c0_61 = arith.constant 0 : index
    %c0_62 = arith.constant 0 : index
    %119 = vector.load %arg2[%c0_61, %c0_62] : memref<1x8xf32, #tpu.memory_space<vmem>>, vector<1x8xf32>
    %c0_63 = arith.constant 0 : index
    %c0_64 = arith.constant 0 : index
    %120 = vector.load %arg3[%c0_63, %c0_64] : memref<1x8xf32, #tpu.memory_space<vmem>>, vector<1x8xf32>
    %cst_65 = arith.constant 1.000000e+00 : f32
    %121 = vector.broadcast %cst_65 : f32 to vector<1x8xf32>
    %122 = arith.subf %121, %118 : vector<1x8xf32>
    %123 = arith.mulf %118, %122 : vector<1x8xf32>
    %124 = math.sqrt %123 : vector<1x8xf32>
    %125 = arith.mulf %119, %124 : vector<1x8xf32>
    %126 = arith.addf %125, %118 : vector<1x8xf32>
    %cst_66 = arith.constant 0.000000e+00 : f32
    %127 = vector.broadcast %cst_66 : f32 to vector<1x8xf32>
    %128 = arith.maximumf %126, %127 : vector<1x8xf32>
    %129 = math.absf %126 : vector<1x8xf32>
    %cst_67 = arith.constant 0.000000e+00 : f32
    %130 = vector.broadcast %cst_67 : f32 to vector<1x8xf32>
    %131 = arith.subf %130, %129 : vector<1x8xf32>
    %132 = math.exp %131 : vector<1x8xf32>
    %133 = math.log1p %132 : vector<1x8xf32>
    %134 = arith.addf %128, %133 : vector<1x8xf32>
    %135 = arith.mulf %134, %76 : vector<1x8xf32>
    %136 = math.sqrt %134 : vector<1x8xf32>
    %137 = arith.mulf %136, %85 : vector<1x8xf32>
    %138 = arith.mulf %120, %137 : vector<1x8xf32>
    %139 = arith.addf %138, %135 : vector<1x8xf32>
    %140 = arith.mulf %139, %134 : vector<1x8xf32>
    %cst_68 = arith.constant 0.000000e+00 : f32
    %141 = vector.broadcast %cst_68 : f32 to vector<1x8xf32>
    %142 = arith.maximumf %140, %141 : vector<1x8xf32>
    %143 = math.absf %140 : vector<1x8xf32>
    %cst_69 = arith.constant 0.000000e+00 : f32
    %144 = vector.broadcast %cst_69 : f32 to vector<1x8xf32>
    %145 = arith.subf %144, %143 : vector<1x8xf32>
    %146 = math.exp %145 : vector<1x8xf32>
    %147 = math.log1p %146 : vector<1x8xf32>
    %148 = arith.addf %142, %147 : vector<1x8xf32>
    %149 = arith.mulf %134, %76 : vector<1x8xf32>
    %150 = math.sqrt %134 : vector<1x8xf32>
    %151 = arith.mulf %150, %85 : vector<1x8xf32>
    %152 = vector.broadcast %50 : vector<8x1xf32> to vector<8x8xf32>
    %153 = vector.broadcast %134 : vector<1x8xf32> to vector<8x8xf32>
    %154 = arith.mulf %152, %153 : vector<8x8xf32>
    %155 = math.sqrt %134 : vector<1x8xf32>
    %156 = vector.broadcast %59 : vector<8x1xf32> to vector<8x8xf32>
    %157 = vector.broadcast %155 : vector<1x8xf32> to vector<8x8xf32>
    %158 = arith.mulf %156, %157 : vector<8x8xf32>
    %cst_70 = arith.constant 9.99999997E-7 : f32
    %159 = vector.broadcast %cst_70 : f32 to vector<8x8xf32>
    %160 = arith.addf %158, %159 : vector<8x8xf32>
    %161 = math.log %160 : vector<8x8xf32>
    %cst_71 = arith.constant 2.000000e+00 : f32
    %162 = vector.broadcast %cst_71 : f32 to vector<8x8xf32>
    %163 = arith.mulf %162, %161 : vector<8x8xf32>
    %cst_72 = arith.constant 9.99999997E-7 : f32
    %164 = vector.broadcast %cst_72 : f32 to vector<1x8xf32>
    %165 = arith.addf %151, %164 : vector<1x8xf32>
    %166 = math.log %165 : vector<1x8xf32>
    %cst_73 = arith.constant 2.000000e+00 : f32
    %167 = vector.broadcast %cst_73 : f32 to vector<1x8xf32>
    %168 = arith.mulf %167, %166 : vector<1x8xf32>
    %169 = vector.broadcast %168 : vector<1x8xf32> to vector<8x8xf32>
    %170 = arith.subf %163, %169 : vector<8x8xf32>
    %171 = arith.mulf %151, %151 : vector<1x8xf32>
    %172 = vector.broadcast %149 : vector<1x8xf32> to vector<8x8xf32>
    %173 = arith.subf %172, %154 : vector<8x8xf32>
    %174 = vector.broadcast %149 : vector<1x8xf32> to vector<8x8xf32>
    %175 = arith.subf %174, %154 : vector<8x8xf32>
    %176 = arith.mulf %173, %175 : vector<8x8xf32>
    %177 = vector.broadcast %171 : vector<1x8xf32> to vector<8x8xf32>
    %178 = arith.addf %177, %176 : vector<8x8xf32>
    %cst_74 = arith.constant 9.99999997E-7 : f32
    %179 = vector.broadcast %cst_74 : f32 to vector<8x8xf32>
    %180 = arith.addf %158, %179 : vector<8x8xf32>
    %cst_75 = arith.constant 9.99999997E-7 : f32
    %181 = vector.broadcast %cst_75 : f32 to vector<8x8xf32>
    %182 = arith.addf %158, %181 : vector<8x8xf32>
    %183 = arith.mulf %180, %182 : vector<8x8xf32>
    %184 = arith.divf %178, %183 : vector<8x8xf32>
    %185 = arith.addf %170, %184 : vector<8x8xf32>
    %cst_76 = arith.constant 1.000000e+00 : f32
    %186 = vector.broadcast %cst_76 : f32 to vector<8x8xf32>
    %187 = arith.subf %185, %186 : vector<8x8xf32>
    %188 = math.absf %187 : vector<8x8xf32>
    %189 = vector.shape_cast %188 : vector<8x8xf32> to vector<1x8x8xf32>
    %cst_77 = arith.constant dense<0.000000e+00> : vector<1xf32>
    %190 = vector.multi_reduction <add>, %189, %cst_77 [1, 2] : vector<1x8x8xf32> to vector<1xf32>
    %191 = vector.shape_cast %190 : vector<1xf32> to vector<1x1x1xf32>
    %192 = vector.extract %191[0, 0, 0] : f32 from vector<1x1x1xf32>
    %193 = vector.broadcast %192 : f32 to vector<1x1xf32>
    %cst_78 = arith.constant 5.000000e-01 : f32
    %194 = vector.broadcast %cst_78 : f32 to vector<1x1xf32>
    %195 = arith.mulf %194, %193 : vector<1x1xf32>
    %196 = arith.subf %75, %118 : vector<1x8xf32>
    %cst_79 = arith.constant 9.99999997E-7 : f32
    %197 = vector.broadcast %cst_79 : f32 to vector<1x8xf32>
    %198 = arith.addf %118, %197 : vector<1x8xf32>
    %199 = math.log %198 : vector<1x8xf32>
    %cst_80 = arith.constant 9.99999997E-7 : f32
    %200 = vector.broadcast %cst_80 : f32 to vector<1x8xf32>
    %201 = arith.addf %75, %200 : vector<1x8xf32>
    %202 = math.log %201 : vector<1x8xf32>
    %203 = arith.subf %199, %202 : vector<1x8xf32>
    %204 = arith.mulf %118, %203 : vector<1x8xf32>
    %205 = arith.addf %196, %204 : vector<1x8xf32>
    %206 = math.absf %205 : vector<1x8xf32>
    %207 = vector.shape_cast %206 : vector<1x8xf32> to vector<1x1x8xf32>
    %cst_81 = arith.constant dense<0.000000e+00> : vector<1xf32>
    %208 = vector.multi_reduction <add>, %207, %cst_81 [1, 2] : vector<1x1x8xf32> to vector<1xf32>
    %209 = vector.shape_cast %208 : vector<1xf32> to vector<1x1x1xf32>
    %210 = vector.extract %209[0, 0, 0] : f32 from vector<1x1x1xf32>
    %211 = vector.broadcast %210 : f32 to vector<1x1xf32>
    %cst_82 = arith.constant dense<0.000000e+00> : vector<1x128xf32>
    %212 = tpu.matmul %148, %1, %cst_82 {dimension_numbers = #tpu.dot_dimension_numbers<[1], [0], [0], [1], [0, 0, 1, 1], [], []>} : vector<1x8xf32>, vector<8x128xf32>, vector<1x128xf32> -> vector<1x128xf32>
    %213 = arith.addf %212, %0 : vector<1x128xf32>
    %c0_83 = arith.constant 0 : index
    %c0_84 = arith.constant 0 : index
    %214 = vector.load %arg19[%c0_83, %c0_84] : memref<128x64xf32, #tpu.memory_space<vmem>>, vector<128x64xf32>
    %cst_85 = arith.constant dense<0.000000e+00> : vector<1x64xf32>
    %215 = tpu.matmul %213, %214, %cst_85 {dimension_numbers = #tpu.dot_dimension_numbers<[1], [0], [0], [1], [0, 0, 1, 1], [], []>} : vector<1x128xf32>, vector<128x64xf32>, vector<1x64xf32> -> vector<1x64xf32>
    %c0_86 = arith.constant 0 : index
    %c0_87 = arith.constant 0 : index
    %216 = vector.load %arg20[%c0_86, %c0_87] : memref<1x64xf32, #tpu.memory_space<vmem>>, vector<1x64xf32>
    %217 = arith.addf %215, %216 : vector<1x64xf32>
    %cst_88 = arith.constant 0.000000e+00 : f32
    %218 = vector.broadcast %cst_88 : f32 to vector<1x128xf32>
    %c0_89 = arith.constant 0 : index
    %c0_90 = arith.constant 0 : index
    %219 = vector.load %arg21[%c0_89, %c0_90] : memref<1x128xf32, #tpu.memory_space<vmem>>, vector<1x128xf32>
    tpu.vector_store %arg21[%c0_89, %c0_90], %218 {strides = array<i32>} : memref<1x128xf32, #tpu.memory_space<vmem>>, vector<1x128xf32>,
    %c0_91 = arith.constant 0 : index
    %c0_92 = arith.constant 0 : index
    %220 = vector.load %arg21[%c0_91, %c0_92] : memref<1x128xf32, #tpu.memory_space<vmem>>, vector<1x64xf32>
    tpu.vector_store %arg21[%c0_91, %c0_92], %217 {strides = array<i32>} : memref<1x128xf32, #tpu.memory_space<vmem>>, vector<1x64xf32>,
    %c0_93 = arith.constant 0 : index
    %c64 = arith.constant 64 : index
    %221 = vector.load %arg21[%c0_93, %c64] : memref<1x128xf32, #tpu.memory_space<vmem>>, vector<1x1xf32>
    tpu.vector_store %arg21[%c0_93, %c64], %195 {strides = array<i32>} : memref<1x128xf32, #tpu.memory_space<vmem>>, vector<1x1xf32>,
    %c0_94 = arith.constant 0 : index
    %c65 = arith.constant 65 : index
    %222 = vector.load %arg21[%c0_94, %c65] : memref<1x128xf32, #tpu.memory_space<vmem>>, vector<1x1xf32>
    tpu.vector_store %arg21[%c0_94, %c65], %211 {strides = array<i32>} : memref<1x128xf32, #tpu.memory_space<vmem>>, vector<1x1xf32>,
    %c0_95 = arith.constant 0 : index
    %c66 = arith.constant 66 : index
    %223 = vector.load %arg21[%c0_95, %c66] : memref<1x128xf32, #tpu.memory_space<vmem>>, vector<1x8xf32>
    tpu.vector_store %arg21[%c0_95, %c66], %148 {strides = array<i32>} : memref<1x128xf32, #tpu.memory_space<vmem>>, vector<1x8xf32>,
    return
  }
}

</mosaic_0001>

<llo_original>
// kernel: tpu_custom_call.1
$region0: #{tpu_custom_call.1}
  #allocation0 [shape = 'u32[]', space=smem, size = 0x4, offset = 0x4, fixed_abs, tag = 'smem constant byte address 0x4 - core index']
  #allocation1 [shape = 'u32[144,128]{1,0:T(1,128)}', space=vmem, size = 0x12000, scoped, tag = 'internal scratch']
  %s0 = inlined_call_operand.vmem [shape: f32[1,128], index: 0, kind: input, shape index: {}]
  %s1 = inlined_call_operand.vmem [shape: f32[8,128], index: 1, kind: input, shape index: {}]
  %s2 = inlined_call_operand.vmem [shape: f32[1,8], index: 2, kind: input, shape index: {}]
  %s3 = inlined_call_operand.vmem [shape: f32[1,8], index: 3, kind: input, shape index: {}]
  %s4 = inlined_call_operand.hbm [shape: f32[128,128], index: 4, kind: input, shape index: {}]
  %s5 = inlined_call_operand.hbm [shape: f32[128,128], index: 5, kind: input, shape index: {}]
  %s6 = inlined_call_operand.vmem [shape: f32[1,128], index: 6, kind: input, shape index: {}]
  %s7 = inlined_call_operand.hbm [shape: f32[128,128], index: 7, kind: input, shape index: {}]
  %s8 = inlined_call_operand.vmem [shape: f32[1,128], index: 8, kind: input, shape index: {}]
  %s9 = inlined_call_operand.vmem [shape: f32[128,256], index: 9, kind: input, shape index: {}]
  %s10 = inlined_call_operand.vmem [shape: f32[1,256], index: 10, kind: input, shape index: {}]
  %s11 = inlined_call_operand.hbm [shape: f32[128,256], index: 11, kind: input, shape index: {}]
  %s12 = inlined_call_operand.vmem [shape: f32[1,256], index: 12, kind: input, shape index: {}]
  %s13 = inlined_call_operand.hbm [shape: f32[128,256], index: 13, kind: input, shape index: {}]
  %s14 = inlined_call_operand.vmem [shape: f32[1,256], index: 14, kind: input, shape index: {}]
  %s15 = inlined_call_operand.vmem [shape: f32[128,8], index: 15, kind: input, shape index: {}]
  %s16 = inlined_call_operand.vmem [shape: f32[8,128], index: 16, kind: input, shape index: {}]
  %s17 = inlined_call_operand.vmem [shape: f32[1,8], index: 17, kind: input, shape index: {}]
  %s18 = inlined_call_operand.vmem [shape: f32[8,1], index: 18, kind: input, shape index: {}]
  %s19 = inlined_call_operand.vmem [shape: f32[128,64], index: 19, kind: input, shape index: {}]
  %s20 = inlined_call_operand.vmem [shape: f32[1,64], index: 20, kind: input, shape index: {}]
  %s21 = inlined_call_operand.hbm [shape: f32[1,128], index: 21, kind: output, shape index: {}]
  %s22 = sld [smem:[#allocation0]]
  $region114: #{tpu_custom_call.1} parent=0
    _
  %s24 = ssub.s32 1, %s22
  %s25 = scalar_select 0, %s24, %s22
  $region1: #{tpu_custom_call.1} parent=0
    #allocation2 [shape = 'u8[65536]{0}', space=vmem, size = 0x10000, scoped, tag = 'input window, operand 4, single buffered']
    #allocation3 [shape = 's32[1]{0}', space=sflag, size = 0x4, scoped, tag = 'scoped memory for tpu_custom_call.1']
    #allocation4 [shape = 's32[1]{0}', space=sflag, size = 0x4, scoped, tag = 'scoped memory for tpu_custom_call.1']
    #allocation5 [shape = 'u8[65536]{0}', space=vmem, size = 0x10000, scoped, tag = 'input window, operand 5, single buffered']
    #allocation6 [shape = 's32[1]{0}', space=sflag, size = 0x4, scoped, tag = 'scoped memory for tpu_custom_call.1']
    #allocation7 [shape = 'u8[65536]{0}', space=vmem, size = 0x10000, scoped, tag = 'input window, operand 7, single buffered']
    #allocation8 [shape = 'u8[131072]{0}', space=vmem, size = 0x20000, scoped, tag = 'input window, operand 11, single buffered']
    #allocation9 [shape = 's32[1]{0}', space=sflag, size = 0x4, scoped, tag = 'scoped memory for tpu_custom_call.1']
    #allocation10 [shape = 'u8[131072]{0}', space=vmem, size = 0x20000, scoped, tag = 'input window, operand 13, single buffered']
    #allocation11 [shape = 'u8[512]{0}', space=vmem, size = 0x400, scoped, tag = 'output window, operand 0, single buffered']
    %26 = vsyncpa [#allocation3], 0
    %27 = vsyncpa [#allocation6], 0
    %28 = vsyncpa [#allocation9], 0
    %29 = vsyncpa [#allocation4], 0
    // Predicated region
    $region2: #{tpu_custom_call.1} parent=1 // pred_check
      _
    $region3: #{tpu_custom_call.1} parent=1 // pred_check_branch
      %31 = sbr.rel (0) target = $region5
    $region4: #{tpu_custom_call.1} parent=1 // pred_region
      _
    $region5: #{tpu_custom_call.1} parent=1 // pred_fallthru
      _
    // Predicated region
    $region6: #{tpu_custom_call.1} parent=1 // pred_check
      _
    $region7: #{tpu_custom_call.1} parent=1 // pred_check_branch
      %33 = sbr.rel (0) target = $region9
    $region8: #{tpu_custom_call.1} parent=1 // pred_region
      _
    $region9: #{tpu_custom_call.1} parent=1 // pred_fallthru
      _
    // Predicated region
    $region10: #{tpu_custom_call.1} parent=1 // pred_check
      _
    $region11: #{tpu_custom_call.1} parent=1 // pred_check_branch
      %35 = sbr.rel (0) target = $region13
    $region12: #{tpu_custom_call.1} parent=1 // pred_region
      _
    $region13: #{tpu_custom_call.1} parent=1 // pred_fallthru
      _
    // Predicated region
    $region14: #{tpu_custom_call.1} parent=1 // pred_check
      _
    $region15: #{tpu_custom_call.1} parent=1 // pred_check_branch
      %37 = sbr.rel (0) target = $region17
    $region16: #{tpu_custom_call.1} parent=1 // pred_region
      _
    $region17: #{tpu_custom_call.1} parent=1 // pred_fallthru
      _
    // Predicated region
    $region18: #{tpu_custom_call.1} parent=1 // pred_check
      _
    $region19: #{tpu_custom_call.1} parent=1 // pred_check_branch
      %39 = sbr.rel (0) target = $region21
    $region20: #{tpu_custom_call.1} parent=1 // pred_region
      %s41 = ssub.s32 2048, 2048
      %42 = vsyncadd [#allocation3], %s41
      %s43 = sshll.u32 [#allocation2], 4
      %s44 = int_to_ptr.vmem [resolvable:$true] %s43
      %49 = dma.hbm_to_vmem [thread:$0]  %s4, 2048, %s44, [#allocation3], 128, 128, 8
    $region21: #{tpu_custom_call.1} parent=1 // pred_fallthru
      _
    // Predicated region
    $region22: #{tpu_custom_call.1} parent=1 // pred_check
      _
    $region23: #{tpu_custom_call.1} parent=1 // pred_check_branch
      %51 = sbr.rel (0) target = $region25
    $region24: #{tpu_custom_call.1} parent=1 // pred_region
      %s53 = ssub.s32 2048, 2048
      %54 = vsyncadd [#allocation6], %s53
      %s55 = sshll.u32 [#allocation5], 4
      %s56 = int_to_ptr.vmem [resolvable:$true] %s55
      %61 = dma.hbm_to_vmem [thread:$0]  %s5, 2048, %s56, [#allocation6], 128, 128, 8
    $region25: #{tpu_custom_call.1} parent=1 // pred_fallthru
      _
    // Predicated region
    $region26: #{tpu_custom_call.1} parent=1 // pred_check
      _
    $region27: #{tpu_custom_call.1} parent=1 // pred_check_branch
      %63 = sbr.rel (0) target = $region29
    $region28: #{tpu_custom_call.1} parent=1 // pred_region
      _
    $region29: #{tpu_custom_call.1} parent=1 // pred_fallthru
      _
    // Predicated region
    $region30: #{tpu_custom_call.1} parent=1 // pred_check
      _
    $region31: #{tpu_custom_call.1} parent=1 // pred_check_branch
      %65 = sbr.rel (0) target = $region33
    $region32: #{tpu_custom_call.1} parent=1 // pred_region
      %s67 = ssub.s32 2048, 2048
      %68 = vsyncadd [#allocation6], %s67
      %s69 = sshll.u32 [#allocation7], 4
      %s70 = int_to_ptr.vmem [resolvable:$true] %s69
      %75 = dma.hbm_to_vmem [thread:$0]  %s7, 2048, %s70, [#allocation6], 128, 128, 8
    $region33: #{tpu_custom_call.1} parent=1 // pred_fallthru
      _
    // Predicated region
    $region34: #{tpu_custom_call.1} parent=1 // pred_check
      _
    $region35: #{tpu_custom_call.1} parent=1 // pred_check_branch
      %77 = sbr.rel (0) target = $region37
    $region36: #{tpu_custom_call.1} parent=1 // pred_region
      _
    $region37: #{tpu_custom_call.1} parent=1 // pred_fallthru
      _
    // Predicated region
    $region38: #{tpu_custom_call.1} parent=1 // pred_check
      _
    $region39: #{tpu_custom_call.1} parent=1 // pred_check_branch
      %79 = sbr.rel (0) target = $region41
    $region40: #{tpu_custom_call.1} parent=1 // pred_region
      _
    $region41: #{tpu_custom_call.1} parent=1 // pred_fallthru
      _
    // Predicated region
    $region42: #{tpu_custom_call.1} parent=1 // pred_check
      _
    $region43: #{tpu_custom_call.1} parent=1 // pred_check_branch
      %81 = sbr.rel (0) target = $region45
    $region44: #{tpu_custom_call.1} parent=1 // pred_region
      _
    $region45: #{tpu_custom_call.1} parent=1 // pred_fallthru
      _
    // Predicated region
    $region46: #{tpu_custom_call.1} parent=1 // pred_check
      _
    $region47: #{tpu_custom_call.1} parent=1 // pred_check_branch
      %83 = sbr.rel (0) target = $region49
    $region48: #{tpu_custom_call.1} parent=1 // pred_region
      %s85 = ssub.s32 4096, 4096
      %86 = vsyncadd [#allocation9], %s85
      %s87 = sshll.u32 [#allocation8], 4
      %s88 = int_to_ptr.vmem [resolvable:$true] %s87
      %93 = dma.hbm_to_vmem [thread:$0]  %s11, 4096, %s88, [#allocation9], 256, 256, 16
    $region49: #{tpu_custom_call.1} parent=1 // pred_fallthru
      _
    // Predicated region
    $region50: #{tpu_custom_call.1} parent=1 // pred_check
      _
    $region51: #{tpu_custom_call.1} parent=1 // pred_check_branch
      %95 = sbr.rel (0) target = $region53
    $region52: #{tpu_custom_call.1} parent=1 // pred_region
      _
    $region53: #{tpu_custom_call.1} parent=1 // pred_fallthru
      _
    // Predicated region
    $region54: #{tpu_custom_call.1} parent=1 // pred_check
      _
    $region55: #{tpu_custom_call.1} parent=1 // pred_check_branch
      %97 = sbr.rel (0) target = $region57
    $region56: #{tpu_custom_call.1} parent=1 // pred_region
      %s99 = ssub.s32 4096, 4096
      %100 = vsyncadd [#allocation9], %s99
      %s101 = sshll.u32 [#allocation10], 4
      %s102 = int_to_ptr.vmem [resolvable:$true] %s101
      %107 = dma.hbm_to_vmem [thread:$0]  %s13, 4096, %s102, [#allocation9], 256, 256, 16
    $region57: #{tpu_custom_call.1} parent=1 // pred_fallthru
      _
    // Predicated region
    $region58: #{tpu_custom_call.1} parent=1 // pred_check
      _
    $region59: #{tpu_custom_call.1} parent=1 // pred_check_branch
      %109 = sbr.rel (0) target = $region61
    $region60: #{tpu_custom_call.1} parent=1 // pred_region
      _
    $region61: #{tpu_custom_call.1} parent=1 // pred_fallthru
      _
    // Predicated region
    $region62: #{tpu_custom_call.1} parent=1 // pred_check
      _
    $region63: #{tpu_custom_call.1} parent=1 // pred_check_branch
      %111 = sbr.rel (0) target = $region65
    $region64: #{tpu_custom_call.1} parent=1 // pred_region
      _
    $region65: #{tpu_custom_call.1} parent=1 // pred_fallthru
      _
    // Predicated region
    $region66: #{tpu_custom_call.1} parent=1 // pred_check
      _
    $region67: #{tpu_custom_call.1} parent=1 // pred_check_branch
      %113 = sbr.rel (0) target = $region69
    $region68: #{tpu_custom_call.1} parent=1 // pred_region
      _
    $region69: #{tpu_custom_call.1} parent=1 // pred_fallthru
      _
    // Predicated region
    $region70: #{tpu_custom_call.1} parent=1 // pred_check
      _
    $region71: #{tpu_custom_call.1} parent=1 // pred_check_branch
      %115 = sbr.rel (0) target = $region73
    $region72: #{tpu_custom_call.1} parent=1 // pred_region
      _
    $region73: #{tpu_custom_call.1} parent=1 // pred_fallthru
      _
    // Predicated region
    $region74: #{tpu_custom_call.1} parent=1 // pred_check
      _
    $region75: #{tpu_custom_call.1} parent=1 // pred_check_branch
      %117 = sbr.rel (0) target = $region77
    $region76: #{tpu_custom_call.1} parent=1 // pred_region
      _
    $region77: #{tpu_custom_call.1} parent=1 // pred_fallthru
      _
    // Predicated region
    $region78: #{tpu_custom_call.1} parent=1 // pred_check
      _
    $region79: #{tpu_custom_call.1} parent=1 // pred_check_branch
      %119 = sbr.rel (0) target = $region81
    $region80: #{tpu_custom_call.1} parent=1 // pred_region
      _
    $region81: #{tpu_custom_call.1} parent=1 // pred_fallthru
      _
    // Predicated region
    $region82: #{tpu_custom_call.1} parent=1 // pred_check
      _
    $region83: #{tpu_custom_call.1} parent=1 // pred_check_branch
      %121 = sbr.rel (0) target = $region85
    $region84: #{tpu_custom_call.1} parent=1 // pred_region
      _
    $region85: #{tpu_custom_call.1} parent=1 // pred_fallthru
      _
    // Predicated region
    $region86: #{tpu_custom_call.1} parent=1 // pred_check
      _
    $region87: #{tpu_custom_call.1} parent=1 // pred_check_branch
      %123 = sbr.rel (0) target = $region89
    $region88: #{tpu_custom_call.1} parent=1 // pred_region
      %124 = dma.done [#allocation3], 2048
    $region89: #{tpu_custom_call.1} parent=1 // pred_fallthru
      _
    // Predicated region
    $region90: #{tpu_custom_call.1} parent=1 // pred_check
      _
    $region91: #{tpu_custom_call.1} parent=1 // pred_check_branch
      %126 = sbr.rel (0) target = $region93
    $region92: #{tpu_custom_call.1} parent=1 // pred_region
      %127 = dma.done [#allocation6], 2048
    $region93: #{tpu_custom_call.1} parent=1 // pred_fallthru
      _
    // Predicated region
    $region94: #{tpu_custom_call.1} parent=1 // pred_check
      _
    $region95: #{tpu_custom_call.1} parent=1 // pred_check_branch
      %129 = sbr.rel (0) target = $region97
    $region96: #{tpu_custom_call.1} parent=1 // pred_region
      %130 = dma.done [#allocation6], 2048
    $region97: #{tpu_custom_call.1} parent=1 // pred_fallthru
      _
    // Predicated region
    $region98: #{tpu_custom_call.1} parent=1 // pred_check
      _
    $region99: #{tpu_custom_call.1} parent=1 // pred_check_branch
      %132 = sbr.rel (0) target = $region101
    $region100: #{tpu_custom_call.1} parent=1 // pred_region
      %133 = dma.done [#allocation9], 4096
    $region101: #{tpu_custom_call.1} parent=1 // pred_fallthru
      _
    // Predicated region
    $region102: #{tpu_custom_call.1} parent=1 // pred_check
      _
    $region103: #{tpu_custom_call.1} parent=1 // pred_check_branch
      %135 = sbr.rel (0) target = $region105
    $region104: #{tpu_custom_call.1} parent=1 // pred_region
      %136 = dma.done [#allocation9], 4096
    $region105: #{tpu_custom_call.1} parent=1 // pred_fallthru
      _
    %v137 = vld [vmem:[%s0] sm:$0x1]
    %v138 = vld [vmem:[%s1] sm:$0xff]
    %v139 = vld [vmem:[#allocation2] sm:$0xff]
    %v140 = vld [vmem:[#allocation2 + $0x8] sm:$0xff]
    %v141 = vld [vmem:[#allocation2 + $0x10] sm:$0xff]
    %v142 = vld [vmem:[#allocation2 + $0x18] sm:$0xff]
    %v143 = vld [vmem:[#allocation2 + $0x20] sm:$0xff]
    %v144 = vld [vmem:[#allocation2 + $0x28] sm:$0xff]
    %v145 = vld [vmem:[#allocation2 + $0x30] sm:$0xff]
    %v146 = vld [vmem:[#allocation2 + $0x38] sm:$0xff]
    %v147 = vld [vmem:[#allocation2 + $0x40] sm:$0xff]
    %v148 = vld [vmem:[#allocation2 + $0x48] sm:$0xff]
    %v149 = vld [vmem:[#allocation2 + $0x50] sm:$0xff]
    %v150 = vld [vmem:[#allocation2 + $0x58] sm:$0xff]
    %v151 = vld [vmem:[#allocation2 + $0x60] sm:$0xff]
    %v152 = vld [vmem:[#allocation2 + $0x68] sm:$0xff]
    %v153 = vld [vmem:[#allocation2 + $0x70] sm:$0xff]
    %v154 = vld [vmem:[#allocation2 + $0x78] sm:$0xff]
    %v155 = vld [vmem:[#allocation5] sm:$0xff]
    %v156 = vld [vmem:[#allocation5 + $0x8] sm:$0xff]
    %v157 = vld [vmem:[#allocation5 + $0x10] sm:$0xff]
    %v158 = vld [vmem:[#allocation5 + $0x18] sm:$0xff]
    %v159 = vld [vmem:[#allocation5 + $0x20] sm:$0xff]
    %v160 = vld [vmem:[#allocation5 + $0x28] sm:$0xff]
    %v161 = vld [vmem:[#allocation5 + $0x30] sm:$0xff]
    %v162 = vld [vmem:[#allocation5 + $0x38] sm:$0xff]
    %v163 = vld [vmem:[#allocation5 + $0x40] sm:$0xff]
    %v164 = vld [vmem:[#allocation5 + $0x48] sm:$0xff]
    %v165 = vld [vmem:[#allocation5 + $0x50] sm:$0xff]
    %v166 = vld [vmem:[#allocation5 + $0x58] sm:$0xff]
    %v167 = vld [vmem:[#allocation5 + $0x60] sm:$0xff]
    %v168 = vld [vmem:[#allocation5 + $0x68] sm:$0xff]
    %v169 = vld [vmem:[#allocation5 + $0x70] sm:$0xff]
    %v170 = vld [vmem:[#allocation5 + $0x78] sm:$0xff]
    %171 = vmatprep.subr.mxu0 0.0
    %172 = vmatpush1.msra.mxu0 %v155
    %173 = vmatprep.subr.mxu0 0.0
    %174 = vmatpush1.msra.mxu0 %v156
    %175 = vmatprep.subr.mxu0 0.0
    %176 = vmatpush1.msra.mxu0 %v157
    %177 = vmatprep.subr.mxu0 0.0
    %178 = vmatpush1.msra.mxu0 %v158
    %179 = vmatprep.subr.mxu0 0.0
    %180 = vmatpush1.msra.mxu0 %v159
    %181 = vmatprep.subr.mxu0 0.0
    %182 = vmatpush1.msra.mxu0 %v160
    %183 = vmatprep.subr.mxu0 0.0
    %184 = vmatpush1.msra.mxu0 %v161
    %185 = vmatprep.subr.mxu0 0.0
    %186 = vmatpush1.msra.mxu0 %v162
    %187 = vmatprep.subr.mxu0 0.0
    %188 = vmatpush1.msra.mxu0 %v163
    %189 = vmatprep.subr.mxu0 0.0
    %190 = vmatpush1.msra.mxu0 %v164
    %191 = vmatprep.subr.mxu0 0.0
    %192 = vmatpush1.msra.mxu0 %v165
    %193 = vmatprep.subr.mxu0 0.0
    %194 = vmatpush1.msra.mxu0 %v166
    %195 = vmatprep.subr.mxu0 0.0
    %196 = vmatpush1.msra.mxu0 %v167
    %197 = vmatprep.subr.mxu0 0.0
    %198 = vmatpush1.msra.mxu0 %v168
    %199 = vmatprep.subr.mxu0 0.0
    %200 = vmatpush1.msra.mxu0 %v169
    %201 = vmatprep.subr.mxu0 0.0
    %202 = vmatpush1.msra.mxu0 %v170
    %203 = vmatprep.subr.mxu0 0.0
    %204 = vmatpush1.msra.mxu0 0.0
    %205 = vmatprep.subr.mxu0 0.0
    %206 = vmatpush1.msra.mxu0 0.0
    %207 = vmatprep.subr.mxu0 0.0
    %208 = vmatpush1.msra.mxu0 0.0
    %209 = vmatprep.subr.mxu0 0.0
    %210 = vmatpush1.msra.mxu0 0.0
    %211 = vmatprep.subr.mxu0 0.0
    %212 = vmatpush1.msra.mxu0 0.0
    %213 = vmatprep.subr.mxu0 0.0
    %214 = vmatpush1.msra.mxu0 0.0
    %215 = vmatprep.subr.mxu0 0.0
    %216 = vmatpush1.msra.mxu0 0.0
    %217 = vmatprep.subr.mxu0 0.0
    %218 = vmatpush1.msra.mxu0 0.0
    %219 = vmatprep.subr.mxu0 0.0
    %220 = vmatpush1.msra.mxu0 0.0
    %221 = vmatprep.subr.mxu0 0.0
    %222 = vmatpush1.msra.mxu0 0.0
    %223 = vmatprep.subr.mxu0 0.0
    %224 = vmatpush1.msra.mxu0 0.0
    %225 = vmatprep.subr.mxu0 0.0
    %226 = vmatpush1.msra.mxu0 0.0
    %227 = vmatprep.subr.mxu0 0.0
    %228 = vmatpush1.msra.mxu0 0.0
    %229 = vmatprep.subr.mxu0 0.0
    %230 = vmatpush1.msra.mxu0 0.0
    %231 = vmatprep.subr.mxu0 0.0
    %232 = vmatpush1.msra.mxu0 0.0
    %233 = vmatprep.subr.mxu0 0.0
    %234 = vmatpush1.msra.mxu0 0.0
    %235 = vmatprep.mubr.f32.mxu0 0.0
    %236 = vmatmul.mubr.f32.gmra.mrb[0].mxu0 %v137
    %v237 = vpop.f32.mrb[0].mxu0
    %v238 = vadd.f32 0.0, %v237
    %v239 = vpop.f32.mrb[0].mxu0
    %240 = vdwg.mxu0
    %v241 = vlaneseq
    %v242 = vshrl.u32 %v241, 7
    %v243 = vsub.s32 0, %v242
    %v244 = vrot.slane %v238, %v243
    %245 = vmatprep.subr.mxu0 0.0
    %246 = vmatpush1.msra.mxu0 %v139
    %247 = vmatprep.subr.mxu0 0.0
    %248 = vmatpush1.msra.mxu0 %v140
    %249 = vmatprep.subr.mxu0 0.0
    %250 = vmatpush1.msra.mxu0 %v141
    %251 = vmatprep.subr.mxu0 0.0
    %252 = vmatpush1.msra.mxu0 %v142
    %253 = vmatprep.subr.mxu0 0.0
    %254 = vmatpush1.msra.mxu0 %v143
    %255 = vmatprep.subr.mxu0 0.0
    %256 = vmatpush1.msra.mxu0 %v144
    %257 = vmatprep.subr.mxu0 0.0
    %258 = vmatpush1.msra.mxu0 %v145
    %259 = vmatprep.subr.mxu0 0.0
    %260 = vmatpush1.msra.mxu0 %v146
    %261 = vmatprep.subr.mxu0 0.0
    %262 = vmatpush1.msra.mxu0 %v147
    %263 = vmatprep.subr.mxu0 0.0
    %264 = vmatpush1.msra.mxu0 %v148
    %265 = vmatprep.subr.mxu0 0.0
    %266 = vmatpush1.msra.mxu0 %v149
    %267 = vmatprep.subr.mxu0 0.0
    %268 = vmatpush1.msra.mxu0 %v150
    %269 = vmatprep.subr.mxu0 0.0
    %270 = vmatpush1.msra.mxu0 %v151
    %271 = vmatprep.subr.mxu0 0.0
    %272 = vmatpush1.msra.mxu0 %v152
    %273 = vmatprep.subr.mxu0 0.0
    %274 = vmatpush1.msra.mxu0 %v153
    %275 = vmatprep.subr.mxu0 0.0
    %276 = vmatpush1.msra.mxu0 %v154
    %277 = vmatprep.subr.mxu0 0.0
    %278 = vmatpush1.msra.mxu0 0.0
    %279 = vmatprep.subr.mxu0 0.0
    %280 = vmatpush1.msra.mxu0 0.0
    %281 = vmatprep.subr.mxu0 0.0
    %282 = vmatpush1.msra.mxu0 0.0
    %283 = vmatprep.subr.mxu0 0.0
    %284 = vmatpush1.msra.mxu0 0.0
    %285 = vmatprep.subr.mxu0 0.0
    %286 = vmatpush1.msra.mxu0 0.0
    %287 = vmatprep.subr.mxu0 0.0
    %288 = vmatpush1.msra.mxu0 0.0
    %289 = vmatprep.subr.mxu0 0.0
    %290 = vmatpush1.msra.mxu0 0.0
    %291 = vmatprep.subr.mxu0 0.0
    %292 = vmatpush1.msra.mxu0 0.0
    %293 = vmatprep.subr.mxu0 0.0
    %294 = vmatpush1.msra.mxu0 0.0
    %295 = vmatprep.subr.mxu0 0.0
    %296 = vmatpush1.msra.mxu0 0.0
    %297 = vmatprep.subr.mxu0 0.0
    %298 = vmatpush1.msra.mxu0 0.0
    %299 = vmatprep.subr.mxu0 0.0
    %300 = vmatpush1.msra.mxu0 0.0
    %301 = vmatprep.subr.mxu0 0.0
    %302 = vmatpush1.msra.mxu0 0.0
    %303 = vmatprep.subr.mxu0 0.0
    %304 = vmatpush1.msra.mxu0 0.0
    %305 = vmatprep.subr.mxu0 0.0
    %306 = vmatpush1.msra.mxu0 0.0
    %307 = vmatprep.subr.mxu0 0.0
    %308 = vmatpush1.msra.mxu0 0.0
    %309 = vmatprep.mubr.f32.mxu0 0.0
    %310 = vmatmul.mubr.f32.gmra.mrb[0].mxu0 %v138
    %v311 = vpop.f32.mrb[0].mxu0
    %v312 = vadd.f32 %v244, %v311
    %v313 = vpop.f32.mrb[0].mxu0
    %314 = vdwg.mxu0
    %v315 = vld [vmem:[%s6] sm:$0x1]
    %v317 = vlaneseq
    %v318 = vshrl.u32 %v317, 7
    %v319 = vsub.s32 0, %v318
    %v320 = vrot.slane %v315, %v319
    %v322 = vadd.f32 %v312, %v320
    %v323 = vmax.f32 %v322, 0.0
    %v324 = vld [vmem:[#allocation7] sm:$0xff]
    %v325 = vld [vmem:[#allocation7 + $0x8] sm:$0xff]
    %v326 = vld [vmem:[#allocation7 + $0x10] sm:$0xff]
    %v327 = vld [vmem:[#allocation7 + $0x18] sm:$0xff]
    %v328 = vld [vmem:[#allocation7 + $0x20] sm:$0xff]
    %v329 = vld [vmem:[#allocation7 + $0x28] sm:$0xff]
    %v330 = vld [vmem:[#allocation7 + $0x30] sm:$0xff]
    %v331 = vld [vmem:[#allocation7 + $0x38] sm:$0xff]
    %v332 = vld [vmem:[#allocation7 + $0x40] sm:$0xff]
    %v333 = vld [vmem:[#allocation7 + $0x48] sm:$0xff]
    %v334 = vld [vmem:[#allocation7 + $0x50] sm:$0xff]
    %v335 = vld [vmem:[#allocation7 + $0x58] sm:$0xff]
    %v336 = vld [vmem:[#allocation7 + $0x60] sm:$0xff]
    %v337 = vld [vmem:[#allocation7 + $0x68] sm:$0xff]
    %v338 = vld [vmem:[#allocation7 + $0x70] sm:$0xff]
    %v339 = vld [vmem:[#allocation7 + $0x78] sm:$0xff]
    %v340 = vld [vmem:[%s8] sm:$0x1]
    %v342 = vlaneseq
    %v343 = vshrl.u32 %v342, 7
    %v344 = vsub.s32 0, %v343
    %v345 = vrot.slane %v340, %v344
    %347 = vmatprep.subr.mxu0 0.0
    %348 = vmatpush1.msra.mxu0 %v324
    %349 = vmatprep.subr.mxu0 0.0
    %350 = vmatpush1.msra.mxu0 %v325
    %351 = vmatprep.subr.mxu0 0.0
    %352 = vmatpush1.msra.mxu0 %v326
    %353 = vmatprep.subr.mxu0 0.0
    %354 = vmatpush1.msra.mxu0 %v327
    %355 = vmatprep.subr.mxu0 0.0
    %356 = vmatpush1.msra.mxu0 %v328
    %357 = vmatprep.subr.mxu0 0.0
    %358 = vmatpush1.msra.mxu0 %v329
    %359 = vmatprep.subr.mxu0 0.0
    %360 = vmatpush1.msra.mxu0 %v330
    %361 = vmatprep.subr.mxu0 0.0
    %362 = vmatpush1.msra.mxu0 %v331
    %363 = vmatprep.subr.mxu0 0.0
    %364 = vmatpush1.msra.mxu0 %v332
    %365 = vmatprep.subr.mxu0 0.0
    %366 = vmatpush1.msra.mxu0 %v333
    %367 = vmatprep.subr.mxu0 0.0
    %368 = vmatpush1.msra.mxu0 %v334
    %369 = vmatprep.subr.mxu0 0.0
    %370 = vmatpush1.msra.mxu0 %v335
    %371 = vmatprep.subr.mxu0 0.0
    %372 = vmatpush1.msra.mxu0 %v336
    %373 = vmatprep.subr.mxu0 0.0
    %374 = vmatpush1.msra.mxu0 %v337
    %375 = vmatprep.subr.mxu0 0.0
    %376 = vmatpush1.msra.mxu0 %v338
    %377 = vmatprep.subr.mxu0 0.0
    %378 = vmatpush1.msra.mxu0 %v339
    %379 = vmatprep.subr.mxu0 0.0
    %380 = vmatpush1.msra.mxu0 0.0
    %381 = vmatprep.subr.mxu0 0.0
    %382 = vmatpush1.msra.mxu0 0.0
    %383 = vmatprep.subr.mxu0 0.0
    %384 = vmatpush1.msra.mxu0 0.0
    %385 = vmatprep.subr.mxu0 0.0
    %386 = vmatpush1.msra.mxu0 0.0
    %387 = vmatprep.subr.mxu0 0.0
    %388 = vmatpush1.msra.mxu0 0.0
    %389 = vmatprep.subr.mxu0 0.0
    %390 = vmatpush1.msra.mxu0 0.0
    %391 = vmatprep.subr.mxu0 0.0
    %392 = vmatpush1.msra.mxu0 0.0
    %393 = vmatprep.subr.mxu0 0.0
    %394 = vmatpush1.msra.mxu0 0.0
    %395 = vmatprep.subr.mxu0 0.0
    %396 = vmatpush1.msra.mxu0 0.0
    %397 = vmatprep.subr.mxu0 0.0
    %398 = vmatpush1.msra.mxu0 0.0
    %399 = vmatprep.subr.mxu0 0.0
    %400 = vmatpush1.msra.mxu0 0.0
    %401 = vmatprep.subr.mxu0 0.0
    %402 = vmatpush1.msra.mxu0 0.0
    %403 = vmatprep.subr.mxu0 0.0
    %404 = vmatpush1.msra.mxu0 0.0
    %405 = vmatprep.subr.mxu0 0.0
    %406 = vmatpush1.msra.mxu0 0.0
    %407 = vmatprep.subr.mxu0 0.0
    %408 = vmatpush1.msra.mxu0 0.0
    %409 = vmatprep.subr.mxu0 0.0
    %410 = vmatpush1.msra.mxu0 0.0
    %411 = vmatprep.mubr.f32.mxu0 0.0
    %412 = vmatmul.mubr.f32.gmra.mrb[0].mxu0 %v323
    %v413 = vpop.f32.mrb[0].mxu0
    %v414 = vadd.f32 %v345, %v413
    %v415 = vpop.f32.mrb[0].mxu0
    %416 = vdwg.mxu0
    %v417 = vld [vmem:[%s9] sm:$0xff]
    %v418 = vld [vmem:[%s9 + $0x8] sm:$0xff]
    %v419 = vld [vmem:[%s9 + $0x10] sm:$0xff]
    %v420 = vld [vmem:[%s9 + $0x18] sm:$0xff]
    %v421 = vld [vmem:[%s9 + $0x20] sm:$0xff]
    %v422 = vld [vmem:[%s9 + $0x28] sm:$0xff]
    %v423 = vld [vmem:[%s9 + $0x30] sm:$0xff]
    %v424 = vld [vmem:[%s9 + $0x38] sm:$0xff]
    %v425 = vld [vmem:[%s9 + $0x40] sm:$0xff]
    %v426 = vld [vmem:[%s9 + $0x48] sm:$0xff]
    %v427 = vld [vmem:[%s9 + $0x50] sm:$0xff]
    %v428 = vld [vmem:[%s9 + $0x58] sm:$0xff]
    %v429 = vld [vmem:[%s9 + $0x60] sm:$0xff]
    %v430 = vld [vmem:[%s9 + $0x68] sm:$0xff]
    %v431 = vld [vmem:[%s9 + $0x70] sm:$0xff]
    %v432 = vld [vmem:[%s9 + $0x78] sm:$0xff]
    %v433 = vld [vmem:[%s9 + $0x80] sm:$0xff]
    %v434 = vld [vmem:[%s9 + $0x88] sm:$0xff]
    %v435 = vld [vmem:[%s9 + $0x90] sm:$0xff]
    %v436 = vld [vmem:[%s9 + $0x98] sm:$0xff]
    %v437 = vld [vmem:[%s9 + $0xa0] sm:$0xff]
    %v438 = vld [vmem:[%s9 + $0xa8] sm:$0xff]
    %v439 = vld [vmem:[%s9 + $0xb0] sm:$0xff]
    %v440 = vld [vmem:[%s9 + $0xb8] sm:$0xff]
    %v441 = vld [vmem:[%s9 + $0xc0] sm:$0xff]
    %v442 = vld [vmem:[%s9 + $0xc8] sm:$0xff]
    %v443 = vld [vmem:[%s9 + $0xd0] sm:$0xff]
    %v444 = vld [vmem:[%s9 + $0xd8] sm:$0xff]
    %v445 = vld [vmem:[%s9 + $0xe0] sm:$0xff]
    %v446 = vld [vmem:[%s9 + $0xe8] sm:$0xff]
    %v447 = vld [vmem:[%s9 + $0xf0] sm:$0xff]
    %v448 = vld [vmem:[%s9 + $0xf8] sm:$0xff]
    %v449 = vld [vmem:[%s10] sm:$0x3]
    %v451 = vlaneseq
    %v452 = vshrl.u32 %v451, 7
    %v453 = vsub.s32 0, %v452
    %v454 = vrot.slane %v449, %v453
    %v455 = vlaneseq
    %v456 = vshrl.u32 %v455, 7
    %v457 = vsub.s32 1, %v456
    %v458 = vrot.slane %v449, %v457
    %461 = vmatprep.subr.mxu0 %v418
    %462 = vmatpush1.msra.mxu0 %v417
    %463 = vmatprep.subr.mxu0 %v420
    %464 = vmatpush1.msra.mxu0 %v419
    %465 = vmatprep.subr.mxu0 %v422
    %466 = vmatpush1.msra.mxu0 %v421
    %467 = vmatprep.subr.mxu0 %v424
    %468 = vmatpush1.msra.mxu0 %v423
    %469 = vmatprep.subr.mxu0 %v426
    %470 = vmatpush1.msra.mxu0 %v425
    %471 = vmatprep.subr.mxu0 %v428
    %472 = vmatpush1.msra.mxu0 %v427
    %473 = vmatprep.subr.mxu0 %v430
    %474 = vmatpush1.msra.mxu0 %v429
    %475 = vmatprep.subr.mxu0 %v432
    %476 = vmatpush1.msra.mxu0 %v431
    %477 = vmatprep.subr.mxu0 %v434
    %478 = vmatpush1.msra.mxu0 %v433
    %479 = vmatprep.subr.mxu0 %v436
    %480 = vmatpush1.msra.mxu0 %v435
    %481 = vmatprep.subr.mxu0 %v438
    %482 = vmatpush1.msra.mxu0 %v437
    %483 = vmatprep.subr.mxu0 %v440
    %484 = vmatpush1.msra.mxu0 %v439
    %485 = vmatprep.subr.mxu0 %v442
    %486 = vmatpush1.msra.mxu0 %v441
    %487 = vmatprep.subr.mxu0 %v444
    %488 = vmatpush1.msra.mxu0 %v443
    %489 = vmatprep.subr.mxu0 %v446
    %490 = vmatpush1.msra.mxu0 %v445
    %491 = vmatprep.subr.mxu0 %v448
    %492 = vmatpush1.msra.mxu0 %v447
    %493 = vmatprep.subr.mxu0 0.0
    %494 = vmatpush1.msra.mxu0 0.0
    %495 = vmatprep.subr.mxu0 0.0
    %496 = vmatpush1.msra.mxu0 0.0
    %497 = vmatprep.subr.mxu0 0.0
    %498 = vmatpush1.msra.mxu0 0.0
    %499 = vmatprep.subr.mxu0 0.0
    %500 = vmatpush1.msra.mxu0 0.0
    %501 = vmatprep.subr.mxu0 0.0
    %502 = vmatpush1.msra.mxu0 0.0
    %503 = vmatprep.subr.mxu0 0.0
    %504 = vmatpush1.msra.mxu0 0.0
    %505 = vmatprep.subr.mxu0 0.0
    %506 = vmatpush1.msra.mxu0 0.0
    %507 = vmatprep.subr.mxu0 0.0
    %508 = vmatpush1.msra.mxu0 0.0
    %509 = vmatprep.subr.mxu0 0.0
    %510 = vmatpush1.msra.mxu0 0.0
    %511 = vmatprep.subr.mxu0 0.0
    %512 = vmatpush1.msra.mxu0 0.0
    %513 = vmatprep.subr.mxu0 0.0
    %514 = vmatpush1.msra.mxu0 0.0
    %515 = vmatprep.subr.mxu0 0.0
    %516 = vmatpush1.msra.mxu0 0.0
    %517 = vmatprep.subr.mxu0 0.0
    %518 = vmatpush1.msra.mxu0 0.0
    %519 = vmatprep.subr.mxu0 0.0
    %520 = vmatpush1.msra.mxu0 0.0
    %521 = vmatprep.subr.mxu0 0.0
    %522 = vmatpush1.msra.mxu0 0.0
    %523 = vmatprep.subr.mxu0 0.0
    %524 = vmatpush1.msra.mxu0 0.0
    %525 = vmatprep.mubr.f32.mxu0 0.0
    %526 = vmatmul.mubr.f32.gmra.mrb[0].mxu0 %v414
    %v527 = vpop.f32.mrb[0].mxu0
    %v528 = vadd.f32 %v454, %v527
    %v529 = vpop.f32.mrb[0].mxu0
    %v530 = vadd.f32 %v458, %v529
    %531 = vdwg.mxu0
    %v532 = vmax.f32 %v528, 0.0
    %v533 = vmax.f32 %v530, 0.0
    %v534 = vld [vmem:[#allocation8] sm:$0xff]
    %v535 = vld [vmem:[#allocation8 + $0x8] sm:$0xff]
    %v536 = vld [vmem:[#allocation8 + $0x10] sm:$0xff]
    %v537 = vld [vmem:[#allocation8 + $0x18] sm:$0xff]
    %v538 = vld [vmem:[#allocation8 + $0x20] sm:$0xff]
    %v539 = vld [vmem:[#allocation8 + $0x28] sm:$0xff]
    %v540 = vld [vmem:[#allocation8 + $0x30] sm:$0xff]
    %v541 = vld [vmem:[#allocation8 + $0x38] sm:$0xff]
    %v542 = vld [vmem:[#allocation8 + $0x40] sm:$0xff]
    %v543 = vld [vmem:[#allocation8 + $0x48] sm:$0xff]
    %v544 = vld [vmem:[#allocation8 + $0x50] sm:$0xff]
    %v545 = vld [vmem:[#allocation8 + $0x58] sm:$0xff]
    %v546 = vld [vmem:[#allocation8 + $0x60] sm:$0xff]
    %v547 = vld [vmem:[#allocation8 + $0x68] sm:$0xff]
    %v548 = vld [vmem:[#allocation8 + $0x70] sm:$0xff]
    %v549 = vld [vmem:[#allocation8 + $0x78] sm:$0xff]
    %v550 = vld [vmem:[#allocation8 + $0x80] sm:$0xff]
    %v551 = vld [vmem:[#allocation8 + $0x88] sm:$0xff]
    %v552 = vld [vmem:[#allocation8 + $0x90] sm:$0xff]
    %v553 = vld [vmem:[#allocation8 + $0x98] sm:$0xff]
    %v554 = vld [vmem:[#allocation8 + $0xa0] sm:$0xff]
    %v555 = vld [vmem:[#allocation8 + $0xa8] sm:$0xff]
    %v556 = vld [vmem:[#allocation8 + $0xb0] sm:$0xff]
    %v557 = vld [vmem:[#allocation8 + $0xb8] sm:$0xff]
    %v558 = vld [vmem:[#allocation8 + $0xc0] sm:$0xff]
    %v559 = vld [vmem:[#allocation8 + $0xc8] sm:$0xff]
    %v560 = vld [vmem:[#allocation8 + $0xd0] sm:$0xff]
    %v561 = vld [vmem:[#allocation8 + $0xd8] sm:$0xff]
    %v562 = vld [vmem:[#allocation8 + $0xe0] sm:$0xff]
    %v563 = vld [vmem:[#allocation8 + $0xe8] sm:$0xff]
    %v564 = vld [vmem:[#allocation8 + $0xf0] sm:$0xff]
    %v565 = vld [vmem:[#allocation8 + $0xf8] sm:$0xff]
    %v566 = vld [vmem:[%s12] sm:$0x3]
    %v568 = vlaneseq
    %v569 = vshrl.u32 %v568, 7
    %v570 = vsub.s32 0, %v569
    %v571 = vrot.slane %v566, %v570
    %v572 = vlaneseq
    %v573 = vshrl.u32 %v572, 7
    %v574 = vsub.s32 1, %v573
    %v575 = vrot.slane %v566, %v574
    %578 = vmatprep.subr.mxu0 %v535
    %579 = vmatpush1.msra.mxu0 %v534
    %580 = vmatprep.subr.mxu0 %v537
    %581 = vmatpush1.msra.mxu0 %v536
    %582 = vmatprep.subr.mxu0 %v539
    %583 = vmatpush1.msra.mxu0 %v538
    %584 = vmatprep.subr.mxu0 %v541
    %585 = vmatpush1.msra.mxu0 %v540
    %586 = vmatprep.subr.mxu0 %v543
    %587 = vmatpush1.msra.mxu0 %v542
    %588 = vmatprep.subr.mxu0 %v545
    %589 = vmatpush1.msra.mxu0 %v544
    %590 = vmatprep.subr.mxu0 %v547
    %591 = vmatpush1.msra.mxu0 %v546
    %592 = vmatprep.subr.mxu0 %v549
    %593 = vmatpush1.msra.mxu0 %v548
    %594 = vmatprep.subr.mxu0 %v551
    %595 = vmatpush1.msra.mxu0 %v550
    %596 = vmatprep.subr.mxu0 %v553
    %597 = vmatpush1.msra.mxu0 %v552
    %598 = vmatprep.subr.mxu0 %v555
    %599 = vmatpush1.msra.mxu0 %v554
    %600 = vmatprep.subr.mxu0 %v557
    %601 = vmatpush1.msra.mxu0 %v556
    %602 = vmatprep.subr.mxu0 %v559
    %603 = vmatpush1.msra.mxu0 %v558
    %604 = vmatprep.subr.mxu0 %v561
    %605 = vmatpush1.msra.mxu0 %v560
    %606 = vmatprep.subr.mxu0 %v563
    %607 = vmatpush1.msra.mxu0 %v562
    %608 = vmatprep.subr.mxu0 %v565
    %609 = vmatpush1.msra.mxu0 %v564
    %610 = vmatprep.subr.mxu0 0.0
    %611 = vmatpush1.msra.mxu0 0.0
    %612 = vmatprep.subr.mxu0 0.0
    %613 = vmatpush1.msra.mxu0 0.0
    %614 = vmatprep.subr.mxu0 0.0
    %615 = vmatpush1.msra.mxu0 0.0
    %616 = vmatprep.subr.mxu0 0.0
    %617 = vmatpush1.msra.mxu0 0.0
    %618 = vmatprep.subr.mxu0 0.0
    %619 = vmatpush1.msra.mxu0 0.0
    %620 = vmatprep.subr.mxu0 0.0
    %621 = vmatpush1.msra.mxu0 0.0
    %622 = vmatprep.subr.mxu0 0.0
    %623 = vmatpush1.msra.mxu0 0.0
    %624 = vmatprep.subr.mxu0 0.0
    %625 = vmatpush1.msra.mxu0 0.0
    %626 = vmatprep.subr.mxu0 0.0
    %627 = vmatpush1.msra.mxu0 0.0
    %628 = vmatprep.subr.mxu0 0.0
    %629 = vmatpush1.msra.mxu0 0.0
    %630 = vmatprep.subr.mxu0 0.0
    %631 = vmatpush1.msra.mxu0 0.0
    %632 = vmatprep.subr.mxu0 0.0
    %633 = vmatpush1.msra.mxu0 0.0
    %634 = vmatprep.subr.mxu0 0.0
    %635 = vmatpush1.msra.mxu0 0.0
    %636 = vmatprep.subr.mxu0 0.0
    %637 = vmatpush1.msra.mxu0 0.0
    %638 = vmatprep.subr.mxu0 0.0
    %639 = vmatpush1.msra.mxu0 0.0
    %640 = vmatprep.subr.mxu0 0.0
    %641 = vmatpush1.msra.mxu0 0.0
    %642 = vmatprep.mubr.f32.mxu0 0.0
    %643 = vmatmul.mubr.f32.gmra.mrb[0].mxu0 %v532
    %v644 = vpop.f32.mrb[0].mxu0
    %v645 = vadd.f32 %v571, %v644
    %v646 = vpop.f32.mrb[0].mxu0
    %v647 = vadd.f32 %v575, %v646
    %648 = vdwg.mxu0
    %v649 = vmax.f32 %v645, 0.0
    %v650 = vmax.f32 %v647, 0.0
    %v651 = vld [vmem:[#allocation10] sm:$0xff]
    %v652 = vld [vmem:[#allocation10 + $0x8] sm:$0xff]
    %v653 = vld [vmem:[#allocation10 + $0x10] sm:$0xff]
    %v654 = vld [vmem:[#allocation10 + $0x18] sm:$0xff]
    %v655 = vld [vmem:[#allocation10 + $0x20] sm:$0xff]
    %v656 = vld [vmem:[#allocation10 + $0x28] sm:$0xff]
    %v657 = vld [vmem:[#allocation10 + $0x30] sm:$0xff]
    %v658 = vld [vmem:[#allocation10 + $0x38] sm:$0xff]
    %v659 = vld [vmem:[#allocation10 + $0x40] sm:$0xff]
    %v660 = vld [vmem:[#allocation10 + $0x48] sm:$0xff]
    %v661 = vld [vmem:[#allocation10 + $0x50] sm:$0xff]
    %v662 = vld [vmem:[#allocation10 + $0x58] sm:$0xff]
    %v663 = vld [vmem:[#allocation10 + $0x60] sm:$0xff]
    %v664 = vld [vmem:[#allocation10 + $0x68] sm:$0xff]
    %v665 = vld [vmem:[#allocation10 + $0x70] sm:$0xff]
    %v666 = vld [vmem:[#allocation10 + $0x78] sm:$0xff]
    %v667 = vld [vmem:[#allocation10 + $0x80] sm:$0xff]
    %v668 = vld [vmem:[#allocation10 + $0x88] sm:$0xff]
    %v669 = vld [vmem:[#allocation10 + $0x90] sm:$0xff]
    %v670 = vld [vmem:[#allocation10 + $0x98] sm:$0xff]
    %v671 = vld [vmem:[#allocation10 + $0xa0] sm:$0xff]
    %v672 = vld [vmem:[#allocation10 + $0xa8] sm:$0xff]
    %v673 = vld [vmem:[#allocation10 + $0xb0] sm:$0xff]
    %v674 = vld [vmem:[#allocation10 + $0xb8] sm:$0xff]
    %v675 = vld [vmem:[#allocation10 + $0xc0] sm:$0xff]
    %v676 = vld [vmem:[#allocation10 + $0xc8] sm:$0xff]
    %v677 = vld [vmem:[#allocation10 + $0xd0] sm:$0xff]
    %v678 = vld [vmem:[#allocation10 + $0xd8] sm:$0xff]
    %v679 = vld [vmem:[#allocation10 + $0xe0] sm:$0xff]
    %v680 = vld [vmem:[#allocation10 + $0xe8] sm:$0xff]
    %v681 = vld [vmem:[#allocation10 + $0xf0] sm:$0xff]
    %v682 = vld [vmem:[#allocation10 + $0xf8] sm:$0xff]
    %v683 = vld [vmem:[%s14] sm:$0x3]
    %v685 = vlaneseq
    %v686 = vshrl.u32 %v685, 7
    %v687 = vsub.s32 0, %v686
    %v688 = vrot.slane %v683, %v687
    %v689 = vlaneseq
    %v690 = vshrl.u32 %v689, 7
    %v691 = vsub.s32 1, %v690
    %v692 = vrot.slane %v683, %v691
    %695 = vmatprep.subr.mxu0 %v652
    %696 = vmatpush1.msra.mxu0 %v651
    %697 = vmatprep.subr.mxu0 %v654
    %698 = vmatpush1.msra.mxu0 %v653
    %699 = vmatprep.subr.mxu0 %v656
    %700 = vmatpush1.msra.mxu0 %v655
    %701 = vmatprep.subr.mxu0 %v658
    %702 = vmatpush1.msra.mxu0 %v657
    %703 = vmatprep.subr.mxu0 %v660
    %704 = vmatpush1.msra.mxu0 %v659
    %705 = vmatprep.subr.mxu0 %v662
    %706 = vmatpush1.msra.mxu0 %v661
    %707 = vmatprep.subr.mxu0 %v664
    %708 = vmatpush1.msra.mxu0 %v663
    %709 = vmatprep.subr.mxu0 %v666
    %710 = vmatpush1.msra.mxu0 %v665
    %711 = vmatprep.subr.mxu0 %v668
    %712 = vmatpush1.msra.mxu0 %v667
    %713 = vmatprep.subr.mxu0 %v670
    %714 = vmatpush1.msra.mxu0 %v669
    %715 = vmatprep.subr.mxu0 %v672
    %716 = vmatpush1.msra.mxu0 %v671
    %717 = vmatprep.subr.mxu0 %v674
    %718 = vmatpush1.msra.mxu0 %v673
    %719 = vmatprep.subr.mxu0 %v676
    %720 = vmatpush1.msra.mxu0 %v675
    %721 = vmatprep.subr.mxu0 %v678
    %722 = vmatpush1.msra.mxu0 %v677
    %723 = vmatprep.subr.mxu0 %v680
    %724 = vmatpush1.msra.mxu0 %v679
    %725 = vmatprep.subr.mxu0 %v682
    %726 = vmatpush1.msra.mxu0 %v681
    %727 = vmatprep.subr.mxu0 0.0
    %728 = vmatpush1.msra.mxu0 0.0
    %729 = vmatprep.subr.mxu0 0.0
    %730 = vmatpush1.msra.mxu0 0.0
    %731 = vmatprep.subr.mxu0 0.0
    %732 = vmatpush1.msra.mxu0 0.0
    %733 = vmatprep.subr.mxu0 0.0
    %734 = vmatpush1.msra.mxu0 0.0
    %735 = vmatprep.subr.mxu0 0.0
    %736 = vmatpush1.msra.mxu0 0.0
    %737 = vmatprep.subr.mxu0 0.0
    %738 = vmatpush1.msra.mxu0 0.0
    %739 = vmatprep.subr.mxu0 0.0
    %740 = vmatpush1.msra.mxu0 0.0
    %741 = vmatprep.subr.mxu0 0.0
    %742 = vmatpush1.msra.mxu0 0.0
    %743 = vmatprep.subr.mxu0 0.0
    %744 = vmatpush1.msra.mxu0 0.0
    %745 = vmatprep.subr.mxu0 0.0
    %746 = vmatpush1.msra.mxu0 0.0
    %747 = vmatprep.subr.mxu0 0.0
    %748 = vmatpush1.msra.mxu0 0.0
    %749 = vmatprep.subr.mxu0 0.0
    %750 = vmatpush1.msra.mxu0 0.0
    %751 = vmatprep.subr.mxu0 0.0
    %752 = vmatpush1.msra.mxu0 0.0
    %753 = vmatprep.subr.mxu0 0.0
    %754 = vmatpush1.msra.mxu0 0.0
    %755 = vmatprep.subr.mxu0 0.0
    %756 = vmatpush1.msra.mxu0 0.0
    %757 = vmatprep.subr.mxu0 0.0
    %758 = vmatpush1.msra.mxu0 0.0
    %759 = vmatprep.mubr.f32.mxu0 0.0
    %760 = vmatmul.mubr.f32.gmra.mrb[0].mxu0 %v533
    %v761 = vpop.f32.mrb[0].mxu0
    %v762 = vadd.f32 %v688, %v761
    %v763 = vpop.f32.mrb[0].mxu0
    %v764 = vadd.f32 %v692, %v763
    %765 = vdwg.mxu0
    %v766 = vmax.f32 %v762, 0.0
    %v767 = vmax.f32 %v764, 0.0
    %v768 = vld [vmem:[%s15] sm:$0xff]
    %v769 = vld [vmem:[%s15 + $0x8] sm:$0xff]
    %v770 = vld [vmem:[%s15 + $0x10] sm:$0xff]
    %v771 = vld [vmem:[%s15 + $0x18] sm:$0xff]
    %v772 = vld [vmem:[%s15 + $0x20] sm:$0xff]
    %v773 = vld [vmem:[%s15 + $0x28] sm:$0xff]
    %v774 = vld [vmem:[%s15 + $0x30] sm:$0xff]
    %v775 = vld [vmem:[%s15 + $0x38] sm:$0xff]
    %v776 = vld [vmem:[%s15 + $0x40] sm:$0xff]
    %v777 = vld [vmem:[%s15 + $0x48] sm:$0xff]
    %v778 = vld [vmem:[%s15 + $0x50] sm:$0xff]
    %v779 = vld [vmem:[%s15 + $0x58] sm:$0xff]
    %v780 = vld [vmem:[%s15 + $0x60] sm:$0xff]
    %v781 = vld [vmem:[%s15 + $0x68] sm:$0xff]
    %v782 = vld [vmem:[%s15 + $0x70] sm:$0xff]
    %v783 = vld [vmem:[%s15 + $0x78] sm:$0xff]
    %v784 = vld [vmem:[%s17] sm:$0x1]
    %v786 = vlaneseq
    %v787 = vshrl.u32 %v786, 7
    %v788 = vsub.s32 0, %v787
    %v789 = vrot.slane %v784, %v788
    %791 = vmatprep.subr.mxu0 0.0
    %792 = vmatpush1.msra.mxu0 %v768
    %793 = vmatprep.subr.mxu0 0.0
    %794 = vmatpush1.msra.mxu0 %v769
    %795 = vmatprep.subr.mxu0 0.0
    %796 = vmatpush1.msra.mxu0 %v770
    %797 = vmatprep.subr.mxu0 0.0
    %798 = vmatpush1.msra.mxu0 %v771
    %799 = vmatprep.subr.mxu0 0.0
    %800 = vmatpush1.msra.mxu0 %v772
    %801 = vmatprep.subr.mxu0 0.0
    %802 = vmatpush1.msra.mxu0 %v773
    %803 = vmatprep.subr.mxu0 0.0
    %804 = vmatpush1.msra.mxu0 %v774
    %805 = vmatprep.subr.mxu0 0.0
    %806 = vmatpush1.msra.mxu0 %v775
    %807 = vmatprep.subr.mxu0 0.0
    %808 = vmatpush1.msra.mxu0 %v776
    %809 = vmatprep.subr.mxu0 0.0
    %810 = vmatpush1.msra.mxu0 %v777
    %811 = vmatprep.subr.mxu0 0.0
    %812 = vmatpush1.msra.mxu0 %v778
    %813 = vmatprep.subr.mxu0 0.0
    %814 = vmatpush1.msra.mxu0 %v779
    %815 = vmatprep.subr.mxu0 0.0
    %816 = vmatpush1.msra.mxu0 %v780
    %817 = vmatprep.subr.mxu0 0.0
    %818 = vmatpush1.msra.mxu0 %v781
    %819 = vmatprep.subr.mxu0 0.0
    %820 = vmatpush1.msra.mxu0 %v782
    %821 = vmatprep.subr.mxu0 0.0
    %822 = vmatpush1.msra.mxu0 %v783
    %823 = vmatprep.subr.mxu0 0.0
    %824 = vmatpush1.msra.mxu0 0.0
    %825 = vmatprep.subr.mxu0 0.0
    %826 = vmatpush1.msra.mxu0 0.0
    %827 = vmatprep.subr.mxu0 0.0
    %828 = vmatpush1.msra.mxu0 0.0
    %829 = vmatprep.subr.mxu0 0.0
    %830 = vmatpush1.msra.mxu0 0.0
    %831 = vmatprep.subr.mxu0 0.0
    %832 = vmatpush1.msra.mxu0 0.0
    %833 = vmatprep.subr.mxu0 0.0
    %834 = vmatpush1.msra.mxu0 0.0
    %835 = vmatprep.subr.mxu0 0.0
    %836 = vmatpush1.msra.mxu0 0.0
    %837 = vmatprep.subr.mxu0 0.0
    %838 = vmatpush1.msra.mxu0 0.0
    %839 = vmatprep.subr.mxu0 0.0
    %840 = vmatpush1.msra.mxu0 0.0
    %841 = vmatprep.subr.mxu0 0.0
    %842 = vmatpush1.msra.mxu0 0.0
    %843 = vmatprep.subr.mxu0 0.0
    %844 = vmatpush1.msra.mxu0 0.0
    %845 = vmatprep.subr.mxu0 0.0
    %846 = vmatpush1.msra.mxu0 0.0
    %847 = vmatprep.subr.mxu0 0.0
    %848 = vmatpush1.msra.mxu0 0.0
    %849 = vmatprep.subr.mxu0 0.0
    %850 = vmatpush1.msra.mxu0 0.0
    %851 = vmatprep.subr.mxu0 0.0
    %852 = vmatpush1.msra.mxu0 0.0
    %853 = vmatprep.subr.mxu0 0.0
    %854 = vmatpush1.msra.mxu0 0.0
    %855 = vmatprep.mubr.f32.mxu0 0.0
    %856 = vmatmul.mubr.f32.gmra.mrb[0].mxu0 %v649
    %v857 = vpop.f32.mrb[0].mxu0
    %v858 = vadd.f32 %v789, %v857
    %v859 = vpop.f32.mrb[0].mxu0
    %860 = vdwg.mxu0
    %v861 = vmax.f32 %v858, 0.0
    %v862 = vand.u32 2147483647, %v858
    %v863 = vsub.f32 0.0, %v862
    %v864 = vmul.f32 %v863, 1.442695
    %v865 = vpow.pop %v864
    %v866 = vadd.f32 %v865, 1.0
    %v867 = vlog2.pop %v866
    %v868 = vmul.f32 %v867, 0.6931472
    %v869 = vmul.f32 -0.5, %v865
    %v870 = vadd.f32 %v869, 1.0
    %v871 = vmul.f32 %v870, %v865
    %v872 = vand.u32 2147483647, %v865
    %vm873 = vcmp.lt.f32.partialorder %v872, 0.0004427343
    %v874 = vsel %vm873, %v871, %v868
    %v875 = vadd.f32 %v861, %v874
    %v876 = vld [vmem:[%s16] sm:$0xff]
    %v877 = vld [vmem:[%s18] sm:$0xff]
    %879 = vset.pattern.permute.xlu0 0
    %880 = vperm.xlu0 %879, %v877
    %v881 = vpop.permute.xlu0 %880
    %883 = vmatprep.subr.mxu0 0.0
    %884 = vmatpush1.xpose.msra.mxu0 %v650
    %885 = vmatprep.subr.mxu0 0.0
    %886 = vmatpush1.xpose.msra.mxu0 %v766
    %887 = vmatprep.subr.mxu0 0.0
    %888 = vmatpush1.xpose.msra.mxu0 %v767
    %889 = vmatprep.subr.mxu0 0.0
    %890 = vmatpush1.xpose.msra.mxu0 0.0
    %891 = vmatprep.subr.mxu0 0.0
    %892 = vmatpush1.xpose.msra.mxu0 0.0
    %893 = vmatprep.subr.mxu0 0.0
    %894 = vmatpush1.xpose.msra.mxu0 0.0
    %895 = vmatprep.subr.mxu0 0.0
    %896 = vmatpush1.xpose.msra.mxu0 0.0
    %897 = vmatprep.subr.mxu0 0.0
    %898 = vmatpush1.xpose.msra.mxu0 0.0
    %899 = vmatprep.subr.mxu0 0.0
    %900 = vmatpush1.xpose.msra.mxu0 0.0
    %901 = vmatprep.subr.mxu0 0.0
    %902 = vmatpush1.xpose.msra.mxu0 0.0
    %903 = vmatprep.subr.mxu0 0.0
    %904 = vmatpush1.xpose.msra.mxu0 0.0
    %905 = vmatprep.subr.mxu0 0.0
    %906 = vmatpush1.xpose.msra.mxu0 0.0
    %907 = vmatprep.subr.mxu0 0.0
    %908 = vmatpush1.xpose.msra.mxu0 0.0
    %909 = vmatprep.subr.mxu0 0.0
    %910 = vmatpush1.xpose.msra.mxu0 0.0
    %911 = vmatprep.subr.mxu0 0.0
    %912 = vmatpush1.xpose.msra.mxu0 0.0
    %913 = vmatprep.subr.mxu0 0.0
    %914 = vmatpush1.xpose.msra.mxu0 0.0
    %915 = vmatprep.subr.mxu0 0.0
    %916 = vmatpush1.xpose.msra.mxu0 0.0
    %917 = vmatprep.subr.mxu0 0.0
    %918 = vmatpush1.xpose.msra.mxu0 0.0
    %919 = vmatprep.subr.mxu0 0.0
    %920 = vmatpush1.xpose.msra.mxu0 0.0
    %921 = vmatprep.subr.mxu0 0.0
    %922 = vmatpush1.xpose.msra.mxu0 0.0
    %923 = vmatprep.subr.mxu0 0.0
    %924 = vmatpush1.xpose.msra.mxu0 0.0
    %925 = vmatprep.subr.mxu0 0.0
    %926 = vmatpush1.xpose.msra.mxu0 0.0
    %927 = vmatprep.subr.mxu0 0.0
    %928 = vmatpush1.xpose.msra.mxu0 0.0
    %929 = vmatprep.subr.mxu0 0.0
    %930 = vmatpush1.xpose.msra.mxu0 0.0
    %931 = vmatprep.subr.mxu0 0.0
    %932 = vmatpush1.xpose.msra.mxu0 0.0
    %933 = vmatprep.subr.mxu0 0.0
    %934 = vmatpush1.xpose.msra.mxu0 0.0
    %935 = vmatprep.subr.mxu0 0.0
    %936 = vmatpush1.xpose.msra.mxu0 0.0
    %937 = vmatprep.subr.mxu0 0.0
    %938 = vmatpush1.xpose.msra.mxu0 0.0
    %939 = vmatprep.subr.mxu0 0.0
    %940 = vmatpush1.xpose.msra.mxu0 0.0
    %941 = vmatprep.subr.mxu0 0.0
    %942 = vmatpush1.xpose.msra.mxu0 0.0
    %943 = vmatprep.subr.mxu0 0.0
    %944 = vmatpush1.xpose.msra.mxu0 0.0
    %945 = vmatprep.subr.mxu0 0.0
    %946 = vmatpush1.xpose.msra.mxu0 0.0
    %947 = vmatprep.mubr.f32.mxu0 0.0
    %948 = vmatmul.mubr.f32.gmra.mrb[0].mxu0 %v876
    %v949 = vpop.f32.mrb[0].mxu0
    %v950 = vadd.f32 %v881, %v949
    %v951 = vpop.f32.mrb[0].mxu0
    %952 = vdwg.mxu0
    %v953 = vsub.f32 0.0, %v950
    %v954 = vmul.f32 %v953, 1.442695
    %v955 = vpow.pop %v954
    %v956 = vadd.f32 %v955, 1.0
    %v957 = vrcp.pop %v956
    %v958 = vmul.f32 1.0, %v957
    %v959 = vmul.f32 %v958, 0.4
    %v960 = vmax.f32 %v950, 0.0
    %v961 = vand.u32 2147483647, %v950
    %v962 = vsub.f32 0.0, %v961
    %v963 = vmul.f32 %v962, 1.442695
    %v964 = vpow.pop %v963
    %v965 = vadd.f32 %v964, 1.0
    %v966 = vlog2.pop %v965
    %v967 = vmul.f32 %v966, 0.6931472
    %v968 = vmul.f32 -0.5, %v964
    %v969 = vadd.f32 %v968, 1.0
    %v970 = vmul.f32 %v969, %v964
    %v971 = vand.u32 2147483647, %v964
    %vm972 = vcmp.lt.f32.partialorder %v971, 0.0004427343
    %v973 = vsel %vm972, %v970, %v967
    %v974 = vadd.f32 %v960, %v973
    %v975 = vadd.f32 %v974, 0.01
    %v976 = vmul.f32 %v975, 2.0
    %v978 = vrot.slane %v974, 1
    %v980 = vmul.f32 %v976, %v978
    %v981 = vmul.f32 %v980, %v978
    %v982 = vadd.f32 %v981, 1.0
    %v983 = vmul.f32 %v981, %v981
    %v984 = vadd.f32 %v983, 1.0
    %v985 = vrsqrt.pop %v984
    %v986 = vmul.f32 %v984, %v985
    %vm987 = vcmp.eq.f32.partialorder %v984, inf
    %v988 = vsel %vm987, %v984, %v986
    %vm989 = vcmp.eq.f32.partialorder %v984, 0.0
    %v990 = vand.u32 %v984, 2147483648
    %v991 = vsel %vm989, %v990, %v988
    %v992 = vsub.f32 %v982, %v991
    %v993 = vmul.f32 %v992, 0.5
    %v994 = vld [vmem:[%s2] sm:$0x1]
    %v995 = vld [vmem:[%s3] sm:$0x1]
    %v996 = vsub.f32 1.0, %v993
    %v997 = vmul.f32 %v993, %v996
    %v998 = vrsqrt.pop %v997
    %v999 = vmul.f32 %v997, %v998
    %vm1000 = vcmp.eq.f32.partialorder %v997, inf
    %v1001 = vsel %vm1000, %v997, %v999
    %vm1002 = vcmp.eq.f32.partialorder %v997, 0.0
    %v1003 = vand.u32 %v997, 2147483648
    %v1004 = vsel %vm1002, %v1003, %v1001
    %v1006 = vcombine.high %v1004, %v1004
    %v1008 = vunpack.c.l.s4 1966171168
    %v1009 = vunpack.c.0.s8 %v1008
    %v1010 = vlaneseq
    %v1011 = vshrl.u32 %v1010, 7
    %v1012 = vsub.s32 %v1009, %v1011
    %v1013 = vrot.slane %v1006, %v1012
    %v1014 = vcombine.high %v1013, %v1013
    %v1016 = vunpack.c.l.s4 1966171168
    %v1017 = vunpack.c.0.s8 %v1016
    %v1018 = vlaneseq
    %v1019 = vshrl.u32 %v1018, 7
    %v1020 = vsub.s32 %v1017, %v1019
    %v1021 = vrot.slane %v1014, %v1020
    %1022 = vrot.lane.b32.xlu0 %v1021, 112
    %v1023 = vpop.permute.xlu0 %1022
    %v1025 = vmul.f32 %v994, %v1023
    %v1027 = vcombine.high %v993, %v993
    %v1029 = vunpack.c.l.s4 1966171168
    %v1030 = vunpack.c.0.s8 %v1029
    %v1031 = vlaneseq
    %v1032 = vshrl.u32 %v1031, 7
    %v1033 = vsub.s32 %v1030, %v1032
    %v1034 = vrot.slane %v1027, %v1033
    %v1035 = vcombine.high %v1034, %v1034
    %v1037 = vunpack.c.l.s4 1966171168
    %v1038 = vunpack.c.0.s8 %v1037
    %v1039 = vlaneseq
    %v1040 = vshrl.u32 %v1039, 7
    %v1041 = vsub.s32 %v1038, %v1040
    %v1042 = vrot.slane %v1035, %v1041
    %1043 = vrot.lane.b32.xlu0 %v1042, 112
    %v1044 = vpop.permute.xlu0 %1043
    %v1046 = vadd.f32 %v1025, %v1044
    %v1047 = vmax.f32 %v1046, 0.0
    %v1048 = vand.u32 2147483647, %v1046
    %v1049 = vsub.f32 0.0, %v1048
    %v1050 = vmul.f32 %v1049, 1.442695
    %v1051 = vpow.pop %v1050
    %v1052 = vadd.f32 %v1051, 1.0
    %v1053 = vlog2.pop %v1052
    %v1054 = vmul.f32 %v1053, 0.6931472
    %v1055 = vmul.f32 -0.5, %v1051
    %v1056 = vadd.f32 %v1055, 1.0
    %v1057 = vmul.f32 %v1056, %v1051
    %v1058 = vand.u32 2147483647, %v1051
    %vm1059 = vcmp.lt.f32.partialorder %v1058, 0.0004427343
    %v1060 = vsel %vm1059, %v1057, %v1054
    %v1061 = vadd.f32 %v1047, %v1060
    %v1064 = vunpack.c.l.s4 1966171168
    %v1065 = vunpack.c.0.s8 %v1064
    %v1066 = vlaneseq
    %v1067 = vshrl.u32 %v1066, 7
    %v1068 = vsub.s32 %v1065, %v1067
    %v1069 = vrot.slane %v950, %v1068
    %v1070 = vcombine.high %v1069, %v1069
    %v1072 = vunpack.c.l.s4 1966171168
    %v1073 = vunpack.c.0.s8 %v1072
    %v1074 = vlaneseq
    %v1075 = vshrl.u32 %v1074, 7
    %v1076 = vsub.s32 %v1073, %v1075
    %v1077 = vrot.slane %v1070, %v1076
    %v1078 = vcombine.high %v1077, %v1077
    %1079 = vrot.lane.b32.xlu0 %v1078, 120
    %v1080 = vpop.permute.xlu0 %1079
    %v1082 = vmul.f32 %v1061, %v1080
    %v1083 = vrsqrt.pop %v1061
    %v1084 = vmul.f32 %v1061, %v1083
    %vm1085 = vcmp.eq.f32.partialorder %v1061, inf
    %v1086 = vsel %vm1085, %v1061, %v1084
    %vm1087 = vcmp.eq.f32.partialorder %v1061, 0.0
    %v1088 = vand.u32 %v1061, 2147483648
    %v1089 = vsel %vm1087, %v1088, %v1086
    %v1090 = vcombine.high %v974, %v974
    %v1092 = vunpack.c.l.s4 1966171168
    %v1093 = vunpack.c.0.s8 %v1092
    %v1094 = vlaneseq
    %v1095 = vshrl.u32 %v1094, 7
    %v1096 = vsub.s32 %v1093, %v1095
    %v1097 = vrot.slane %v1090, %v1096
    %v1099 = vunpack.c.l.s4 1966171168
    %v1100 = vunpack.c.0.s8 %v1099
    %v1101 = vlaneseq
    %v1102 = vshrl.u32 %v1101, 7
    %v1103 = vsub.s32 %v1100, %v1102
    %v1104 = vrot.slane %v1097, %v1103
    %1105 = vrot.lane.b32.xlu0 %v1104, 120
    %v1106 = vpop.permute.xlu0 %1105
    %v1108 = vmul.f32 %v1089, %v1106
    %v1109 = vmul.f32 %v995, %v1108
    %v1110 = vadd.f32 %v1109, %v1082
    %v1111 = vmul.f32 %v1110, %v1061
    %v1112 = vmax.f32 %v1111, 0.0
    %v1113 = vand.u32 2147483647, %v1111
    %v1114 = vsub.f32 0.0, %v1113
    %v1115 = vmul.f32 %v1114, 1.442695
    %v1116 = vpow.pop %v1115
    %v1117 = vadd.f32 %v1116, 1.0
    %v1118 = vlog2.pop %v1117
    %v1119 = vmul.f32 %v1118, 0.6931472
    %v1120 = vmul.f32 -0.5, %v1116
    %v1121 = vadd.f32 %v1120, 1.0
    %v1122 = vmul.f32 %v1121, %v1116
    %v1123 = vand.u32 2147483647, %v1116
    %vm1124 = vcmp.lt.f32.partialorder %v1123, 0.0004427343
    %v1125 = vsel %vm1124, %v1122, %v1119
    %v1126 = vadd.f32 %v1112, %v1125
    %1128 = vset.pattern.permute.xlu0 0
    %1129 = vperm.xlu0 %1128, %v858
    %v1130 = vpop.permute.xlu0 %1129
    %v1133 = vlaneseq
    %v1134 = vshrl.u32 %v1133, 7
    %v1135 = vsub.s32 0, %v1134
    %v1136 = vrot.slane %v1061, %v1135
    %v1138 = vmul.f32 %v1130, %v1136
    %1140 = vset.pattern.permute.xlu0 1
    %1141 = vperm.xlu0 %1140, %v875
    %v1142 = vpop.permute.xlu0 %1141
    %v1145 = vlaneseq
    %v1146 = vshrl.u32 %v1145, 7
    %v1147 = vsub.s32 0, %v1146
    %v1148 = vrot.slane %v1089, %v1147
    %v1150 = vmul.f32 %v1142, %v1148
    %v1151 = vadd.f32 %v1150, 1e-06
    %v1152 = vlog2.pop %v1151
    %v1153 = vmul.f32 %v1152, 0.6931472
    %v1154 = vmul.f32 %v1153, 2.0
    %v1155 = vadd.f32 %v1108, 1e-06
    %v1156 = vlog2.pop %v1155
    %v1157 = vmul.f32 %v1156, 0.6931472
    %v1158 = vmul.f32 %v1157, 2.0
    %v1160 = vlaneseq
    %v1161 = vshrl.u32 %v1160, 7
    %v1162 = vsub.s32 0, %v1161
    %v1163 = vrot.slane %v1158, %v1162
    %v1165 = vsub.f32 %v1154, %v1163
    %v1166 = vmul.f32 %v1108, %v1108
    %v1168 = vlaneseq
    %v1169 = vshrl.u32 %v1168, 7
    %v1170 = vsub.s32 0, %v1169
    %v1171 = vrot.slane %v1082, %v1170
    %v1173 = vsub.f32 %v1171, %v1138
    %v1174 = vmul.f32 %v1173, %v1173
    %v1176 = vlaneseq
    %v1177 = vshrl.u32 %v1176, 7
    %v1178 = vsub.s32 0, %v1177
    %v1179 = vrot.slane %v1166, %v1178
    %v1181 = vadd.f32 %v1179, %v1174
    %v1182 = vmul.f32 %v1151, %v1151
    %v1183 = vrcp.pop %v1182
    %v1184 = vmul.f32 %v1181, %v1183
    %v1185 = vadd.f32 %v1165, %v1184
    %v1186 = vsub.f32 %v1185, 1.0
    %v1187 = vand.u32 2147483647, %v1186
    %vm1188 = vcmask 64512
    %v1189 = vsel %vm1188, %v1187, 0.0
    %1190 = vadd.xlane.f32.xlu0 %v1189
    %v1191 = vpop.xlane.xlu0 %1190
    %v1192 = vrot.slane %v1191, 4
    %v1193 = vadd.f32 %v1191, %v1192
    %v1194 = vrot.slane %v1193, 2
    %v1195 = vadd.f32 %v1193, %v1194
    %v1196 = vrot.slane %v1195, 1
    %v1197 = vadd.f32 %v1195, %v1196
    %s1198 = vtos %v1197
    %v1199 = vstv %s1198
    %v1200 = vmul.f32 %v1199, 0.5
    %v1201 = vrot.slane %v993, 3
    %1202 = vrot.lane.b32.xlu0 %v1201, 112
    %v1203 = vpop.permute.xlu0 %1202
    %v1205 = vsub.f32 %v959, %v1203
    %v1206 = vadd.f32 %v993, 1e-06
    %v1207 = vlog2.pop %v1206
    %v1208 = vmul.f32 %v1207, 0.6931472
    %v1209 = vadd.f32 %v959, 1e-06
    %v1210 = vlog2.pop %v1209
    %v1211 = vmul.f32 %v1210, 0.6931472
    %v1213 = vrot.slane %v1211, 5
    %1214 = vrot.lane.b32.xlu0 %v1213, 16
    %v1215 = vpop.permute.xlu0 %1214
    %v1217 = vsub.f32 %v1208, %v1215
    %v1218 = vmul.f32 %v993, %v1217
    %v1220 = vrot.slane %v1218, 3
    %1221 = vrot.lane.b32.xlu0 %v1220, 112
    %v1222 = vpop.permute.xlu0 %1221
    %v1224 = vadd.f32 %v1205, %v1222
    %v1225 = vand.u32 2147483647, %v1224
    %v1227 = vrot.slane %v1225, 2
    %vm1229 = vcmask 57344
    %v1230 = vsel %vm1229, %v1227, 0.0
    %1231 = vadd.xlane.f32.xlu0 %v1230
    %v1232 = vpop.xlane.xlu0 %1231
    %v1233 = vrot.slane %v1232, 4
    %v1234 = vadd.f32 %v1232, %v1233
    %v1235 = vrot.slane %v1234, 2
    %v1236 = vadd.f32 %v1234, %v1235
    %v1237 = vrot.slane %v1236, 1
    %v1238 = vadd.f32 %v1236, %v1237
    %s1239 = vtos %v1238
    %v1240 = vstv %s1239
    %v1242 = vsel %vm1188, %v1126, 0
    %1244 = vmatprep.subr.mxu0 0.0
    %1245 = vmatpush1.msra.mxu0 %v138
    %1246 = vmatprep.subr.mxu0 0.0
    %1247 = vmatpush1.msra.mxu0 0.0
    %1248 = vmatprep.subr.mxu0 0.0
    %1249 = vmatpush1.msra.mxu0 0.0
    %1250 = vmatprep.subr.mxu0 0.0
    %1251 = vmatpush1.msra.mxu0 0.0
    %1252 = vmatprep.subr.mxu0 0.0
    %1253 = vmatpush1.msra.mxu0 0.0
    %1254 = vmatprep.subr.mxu0 0.0
    %1255 = vmatpush1.msra.mxu0 0.0
    %1256 = vmatprep.subr.mxu0 0.0
    %1257 = vmatpush1.msra.mxu0 0.0
    %1258 = vmatprep.subr.mxu0 0.0
    %1259 = vmatpush1.msra.mxu0 0.0
    %1260 = vmatprep.subr.mxu0 0.0
    %1261 = vmatpush1.msra.mxu0 0.0
    %1262 = vmatprep.subr.mxu0 0.0
    %1263 = vmatpush1.msra.mxu0 0.0
    %1264 = vmatprep.subr.mxu0 0.0
    %1265 = vmatpush1.msra.mxu0 0.0
    %1266 = vmatprep.subr.mxu0 0.0
    %1267 = vmatpush1.msra.mxu0 0.0
    %1268 = vmatprep.subr.mxu0 0.0
    %1269 = vmatpush1.msra.mxu0 0.0
    %1270 = vmatprep.subr.mxu0 0.0
    %1271 = vmatpush1.msra.mxu0 0.0
    %1272 = vmatprep.subr.mxu0 0.0
    %1273 = vmatpush1.msra.mxu0 0.0
    %1274 = vmatprep.subr.mxu0 0.0
    %1275 = vmatpush1.msra.mxu0 0.0
    %1276 = vmatprep.subr.mxu0 0.0
    %1277 = vmatpush1.msra.mxu0 0.0
    %1278 = vmatprep.subr.mxu0 0.0
    %1279 = vmatpush1.msra.mxu0 0.0
    %1280 = vmatprep.subr.mxu0 0.0
    %1281 = vmatpush1.msra.mxu0 0.0
    %1282 = vmatprep.subr.mxu0 0.0
    %1283 = vmatpush1.msra.mxu0 0.0
    %1284 = vmatprep.subr.mxu0 0.0
    %1285 = vmatpush1.msra.mxu0 0.0
    %1286 = vmatprep.subr.mxu0 0.0
    %1287 = vmatpush1.msra.mxu0 0.0
    %1288 = vmatprep.subr.mxu0 0.0
    %1289 = vmatpush1.msra.mxu0 0.0
    %1290 = vmatprep.subr.mxu0 0.0
    %1291 = vmatpush1.msra.mxu0 0.0
    %1292 = vmatprep.subr.mxu0 0.0
    %1293 = vmatpush1.msra.mxu0 0.0
    %1294 = vmatprep.subr.mxu0 0.0
    %1295 = vmatpush1.msra.mxu0 0.0
    %1296 = vmatprep.subr.mxu0 0.0
    %1297 = vmatpush1.msra.mxu0 0.0
    %1298 = vmatprep.subr.mxu0 0.0
    %1299 = vmatpush1.msra.mxu0 0.0
    %1300 = vmatprep.subr.mxu0 0.0
    %1301 = vmatpush1.msra.mxu0 0.0
    %1302 = vmatprep.subr.mxu0 0.0
    %1303 = vmatpush1.msra.mxu0 0.0
    %1304 = vmatprep.subr.mxu0 0.0
    %1305 = vmatpush1.msra.mxu0 0.0
    %1306 = vmatprep.subr.mxu0 0.0
    %1307 = vmatpush1.msra.mxu0 0.0
    %1308 = vmatprep.mubr.f32.mxu0 0.0
    %1309 = vmatmul.mubr.f32.gmra.mrb[0].mxu0 %v1242
    %v1310 = vpop.f32.mrb[0].mxu0
    %v1311 = vadd.f32 %v137, %v1310
    %v1312 = vpop.f32.mrb[0].mxu0
    %1313 = vdwg.mxu0
    %v1314 = vld [vmem:[%s19] sm:$0xff]
    %v1315 = vld [vmem:[%s19 + $0x8] sm:$0xff]
    %v1316 = vld [vmem:[%s19 + $0x10] sm:$0xff]
    %v1317 = vld [vmem:[%s19 + $0x18] sm:$0xff]
    %v1318 = vld [vmem:[%s19 + $0x20] sm:$0xff]
    %v1319 = vld [vmem:[%s19 + $0x28] sm:$0xff]
    %v1320 = vld [vmem:[%s19 + $0x30] sm:$0xff]
    %v1321 = vld [vmem:[%s19 + $0x38] sm:$0xff]
    %v1322 = vld [vmem:[%s19 + $0x40] sm:$0xff]
    %v1323 = vld [vmem:[%s19 + $0x48] sm:$0xff]
    %v1324 = vld [vmem:[%s19 + $0x50] sm:$0xff]
    %v1325 = vld [vmem:[%s19 + $0x58] sm:$0xff]
    %v1326 = vld [vmem:[%s19 + $0x60] sm:$0xff]
    %v1327 = vld [vmem:[%s19 + $0x68] sm:$0xff]
    %v1328 = vld [vmem:[%s19 + $0x70] sm:$0xff]
    %v1329 = vld [vmem:[%s19 + $0x78] sm:$0xff]
    %v1330 = vld [vmem:[%s20] sm:$0x1]
    %1331 = vmatprep.subr.mxu0 0.0
    %1332 = vmatpush1.msra.mxu0 %v1314
    %1333 = vmatprep.subr.mxu0 0.0
    %1334 = vmatpush1.msra.mxu0 %v1315
    %1335 = vmatprep.subr.mxu0 0.0
    %1336 = vmatpush1.msra.mxu0 %v1316
    %1337 = vmatprep.subr.mxu0 0.0
    %1338 = vmatpush1.msra.mxu0 %v1317
    %1339 = vmatprep.subr.mxu0 0.0
    %1340 = vmatpush1.msra.mxu0 %v1318
    %1341 = vmatprep.subr.mxu0 0.0
    %1342 = vmatpush1.msra.mxu0 %v1319
    %1343 = vmatprep.subr.mxu0 0.0
    %1344 = vmatpush1.msra.mxu0 %v1320
    %1345 = vmatprep.subr.mxu0 0.0
    %1346 = vmatpush1.msra.mxu0 %v1321
    %1347 = vmatprep.subr.mxu0 0.0
    %1348 = vmatpush1.msra.mxu0 %v1322
    %1349 = vmatprep.subr.mxu0 0.0
    %1350 = vmatpush1.msra.mxu0 %v1323
    %1351 = vmatprep.subr.mxu0 0.0
    %1352 = vmatpush1.msra.mxu0 %v1324
    %1353 = vmatprep.subr.mxu0 0.0
    %1354 = vmatpush1.msra.mxu0 %v1325
    %1355 = vmatprep.subr.mxu0 0.0
    %1356 = vmatpush1.msra.mxu0 %v1326
    %1357 = vmatprep.subr.mxu0 0.0
    %1358 = vmatpush1.msra.mxu0 %v1327
    %1359 = vmatprep.subr.mxu0 0.0
    %1360 = vmatpush1.msra.mxu0 %v1328
    %1361 = vmatprep.subr.mxu0 0.0
    %1362 = vmatpush1.msra.mxu0 %v1329
    %1363 = vmatprep.subr.mxu0 0.0
    %1364 = vmatpush1.msra.mxu0 0.0
    %1365 = vmatprep.subr.mxu0 0.0
    %1366 = vmatpush1.msra.mxu0 0.0
    %1367 = vmatprep.subr.mxu0 0.0
    %1368 = vmatpush1.msra.mxu0 0.0
    %1369 = vmatprep.subr.mxu0 0.0
    %1370 = vmatpush1.msra.mxu0 0.0
    %1371 = vmatprep.subr.mxu0 0.0
    %1372 = vmatpush1.msra.mxu0 0.0
    %1373 = vmatprep.subr.mxu0 0.0
    %1374 = vmatpush1.msra.mxu0 0.0
    %1375 = vmatprep.subr.mxu0 0.0
    %1376 = vmatpush1.msra.mxu0 0.0
    %1377 = vmatprep.subr.mxu0 0.0
    %1378 = vmatpush1.msra.mxu0 0.0
    %1379 = vmatprep.subr.mxu0 0.0
    %1380 = vmatpush1.msra.mxu0 0.0
    %1381 = vmatprep.subr.mxu0 0.0
    %1382 = vmatpush1.msra.mxu0 0.0
    %1383 = vmatprep.subr.mxu0 0.0
    %1384 = vmatpush1.msra.mxu0 0.0
    %1385 = vmatprep.subr.mxu0 0.0
    %1386 = vmatpush1.msra.mxu0 0.0
    %1387 = vmatprep.subr.mxu0 0.0
    %1388 = vmatpush1.msra.mxu0 0.0
    %1389 = vmatprep.subr.mxu0 0.0
    %1390 = vmatpush1.msra.mxu0 0.0
    %1391 = vmatprep.subr.mxu0 0.0
    %1392 = vmatpush1.msra.mxu0 0.0
    %1393 = vmatprep.subr.mxu0 0.0
    %1394 = vmatpush1.msra.mxu0 0.0
    %1395 = vmatprep.mubr.f32.mxu0 0.0
    %1396 = vmatmul.mubr.f32.gmra.mrb[0].mxu0 %v1311
    %v1397 = vpop.f32.mrb[0].mxu0
    %v1398 = vadd.f32 %v1330, %v1397
    %v1399 = vpop.f32.mrb[0].mxu0
    %1400 = vdwg.mxu0
    %1401 = vst [vmem:[#allocation11] sm:$0x1] 0.0
    %vm1402 = vcmask 516096
    %1403 = vst.msk [vmem:[#allocation11] sm:$0x1] %vm1402, %v1398
    %vm1404 = vcmask 524800
    %1405 = vst.msk [vmem:[#allocation11] sm:$0x1] %vm1404, %v1200
    %vm1406 = vcmask 533000
    %1407 = vst.msk [vmem:[#allocation11] sm:$0x1] %vm1406, %v1240
    %v1408 = vlaneseq
    %v1409 = vshrl.u32 %v1408, 7
    %v1410 = vsub.s32 0, %v1409
    %v1411 = vrot.slane %v1126, %v1410
    %1412 = vrot.lane.b32.xlu0 %v1411, 66
    %v1413 = vpop.permute.xlu0 %1412
    %vm1415 = vcmask 598544
    %1416 = vst.msk [vmem:[#allocation11] sm:$0x1] %vm1415, %v1413
    // Predicated region
    $region106: #{tpu_custom_call.1} parent=1 // pred_check
      _
    $region107: #{tpu_custom_call.1} parent=1 // pred_check_branch
      %1418 = sbr.rel (0) target = $region109
    $region108: #{tpu_custom_call.1} parent=1 // pred_region
      %s1420 = ssub.s32 16, 16
      %1421 = vsyncadd [#allocation4], %s1420
      %s1423 = sshll.u32 [#allocation11], 4
      %s1424 = int_to_ptr.vmem [resolvable:$true] %s1423
      %1426 = dma.vmem_to_hbm [thread:$0]  %s1424, 16, %s21, [#allocation4]
    $region109: #{tpu_custom_call.1} parent=1 // pred_fallthru
      _
    // Predicated region
    $region110: #{tpu_custom_call.1} parent=1 // pred_check
      _
    $region111: #{tpu_custom_call.1} parent=1 // pred_check_branch
      %1428 = sbr.rel (0) target = $region113
    $region112: #{tpu_custom_call.1} parent=1 // pred_region
      %1429 = dma.done [#allocation4], 16
    $region113: #{tpu_custom_call.1} parent=1 // pred_fallthru
      _
    %1430 = vsyncpa [#allocation3], 1
    %1431 = vsyncpa [#allocation6], 1
    %1432 = vsyncpa [#allocation9], 1
    %1433 = vsyncpa [#allocation4], 1

</llo_original>
